<compile_context>
chip_gen: v7x
topology: tpu7x:2x2x1
jax: 0.10.0
libtpu: 0.0.40
codegen_flags: <defaults>
</compile_context>

<pallas_src>
import functools

import jax
import jax.numpy as jnp
from jax import lax
from jax.experimental import pallas as pl
from jax.experimental.pallas import tpu as pltpu


def _hard_swish_conv(w_ck, x_kt):
    """w_ck: (C, K)   x_kt: (K, T)   ->   v5 = hard-swish(1x1 conv): (C, T).

    The bias is folded into the matmul (one input channel is all-ones), so
    columns whose input is all-zero (HW-tail padding) produce exactly 0.
    """
    v1 = jnp.dot(w_ck, x_kt, preferred_element_type=jnp.float32)  # MXU
    v3 = jnp.clip(v1 + 3.0, 0.0, 6.0)            # clamp(3 + v1, 0, 6)
    return v1 * v3 * (1.0 / 6.0)                 # v1 * v3 / 6


def _stats_kernel(x_ref, w_ref, stats_ref):
    """Phase 1: per-image, per-channel sum (lane 0) and sum-of-squares (lane 1)."""
    t = pl.program_id(1)

    @pl.when(t == 0)
    def _():
        stats_ref[...] = jnp.zeros_like(stats_ref)

    v5 = _hard_swish_conv(w_ref[...], x_ref[0])
    stats_ref[0, :, 0:1] += jnp.sum(v5, axis=1, keepdims=True)
    stats_ref[0, :, 1:2] += jnp.sum(v5 * v5, axis=1, keepdims=True)


def _normalize_kernel(x_ref, w_ref, stats_ref, o_ref, *, inv_m, eps):
    """Phase 2: recompute hard-swish tile, combine partial stats, BN + tanh."""
    v5 = _hard_swish_conv(w_ref[...], x_ref[0])              # (C, T)
    totals = jnp.sum(stats_ref[...], axis=0)                 # (C, 2) over images
    mean = totals[:, 0:1] * inv_m                             # (C, 1)
    var = jnp.maximum(totals[:, 1:2] * inv_m - mean * mean, 0.0)
    inv_std = lax.rsqrt(var + eps)
    # TODO(synk): on v7x the single EUP pipe (tanh) may bind before the HBM
    # store; a VPU rational approximation could relieve it if profiling shows
    # EUP saturation.  Output kept f32 to match the PyTorch module exactly
    # (bf16 store would halve write traffic on v5e if tolerable downstream).
    o_ref[0] = jnp.tanh((v5 - mean) * inv_std)


def model_forward(x_nchw, w_conv, b_conv, *, tile_hw=2048, eps=1e-5):
    """x_nchw: (N, 3, H, W) f32.  Returns (N, 100, H+2, W+2) f32, NCHW."""
    n, cin, h, w = x_nchw.shape
    cout = w_conv.shape[0]
    ho, wo = h + 2, w + 2                        # 1x1 kernel with padding=1
    hw = ho * wo
    m = n * hw
    k_pad = 8                                    # 3 input ch + 1 bias ch + zeros

    # Tile the flattened spatial axis.  Small problems use one full-dim tile
    # (always a legal block); large ones use lane-dense 128-multiple tiles
    # with a zero-padded input tail (the ones-channel tail is zero too, so
    # padded columns contribute nothing to the BN statistics).
    if hw <= tile_hw:
        tile_hw = hw
        num_hw_tiles = 1
        hw_pad = hw
    else:
        num_hw_tiles = pl.cdiv(hw, tile_hw)
        hw_pad = num_hw_tiles * tile_hw

    # Glue on 3/8-channel tensors only (negligible traffic, no transposes):
    # spatial zero-pad, flatten HW, append the all-ones bias channel, pad.
    x_pad = jnp.pad(x_nchw, ((0, 0), (0, 0), (1, 1), (1, 1)))       # (N,3,HO,WO)
    x_flat = x_pad.reshape(n, cin, hw)
    ones = jnp.ones((n, 1, hw), x_flat.dtype)
    x_aug = jnp.concatenate([x_flat, ones], axis=1)                  # (N,4,HW)
    x_aug = jnp.pad(x_aug, ((0, 0), (0, k_pad - cin - 1), (0, hw_pad - hw)))

    w_aug = jnp.concatenate(
        [w_conv.reshape(cout, cin), b_conv.reshape(cout, 1)], axis=1)
    w_aug = jnp.pad(w_aug, ((0, 0), (0, k_pad - cin - 1)))           # (100,8)

    x_spec = pl.BlockSpec((1, k_pad, tile_hw), lambda nn, t: (nn, 0, t))
    w_spec = pl.BlockSpec((cout, k_pad), lambda nn, t: (0, 0))

    # Phase 1: per-image partial stats.  Batch axis "parallel" (v7x: shards
    # across both TensorCores); HW axis is the resident-accumulator reduction.
    stats = pl.pallas_call(
        _stats_kernel,
        out_shape=jax.ShapeDtypeStruct((n, cout, 2), jnp.float32),
        grid=(n, num_hw_tiles),
        in_specs=[x_spec, w_spec],
        out_specs=pl.BlockSpec((1, cout, 2), lambda nn, t: (nn, 0, 0)),
        compiler_params=pltpu.CompilerParams(
            dimension_semantics=("parallel", "arbitrary")),
    )(x_aug, w_aug)

    # Phase 2: recompute hard-swish, normalize + tanh, write channel-major
    # output that is already NCHW after a free reshape (no slice/transpose).
    out_flat = pl.pallas_call(
        functools.partial(_normalize_kernel, inv_m=1.0 / m, eps=eps),
        out_shape=jax.ShapeDtypeStruct((n, cout, hw), jnp.float32),
        grid=(n, num_hw_tiles),
        in_specs=[x_spec, w_spec,
                  pl.BlockSpec((n, cout, 2), lambda nn, t: (0, 0, 0))],
        out_specs=pl.BlockSpec((1, cout, tile_hw), lambda nn, t: (nn, 0, t)),
        compiler_params=pltpu.CompilerParams(
            dimension_semantics=("parallel", "parallel")),
    )(x_aug, w_aug, stats)

    return out_flat.reshape(n, cout, ho, wo)


def reference_forward(x_nchw, w_conv, b_conv):
    """Pure-JAX reference mirroring the PyTorch module (training-mode BN)."""
    n, cin, h, w = x_nchw.shape
    cout = w_conv.shape[0]
    x_pad = jnp.pad(x_nchw, ((0, 0), (0, 0), (1, 1), (1, 1)))
    v1 = jnp.einsum("nchw,oc->nohw", x_pad, w_conv.reshape(cout, cin)) \
        + b_conv[None, :, None, None]
    v3 = jnp.clip(v1 + 3.0, 0.0, 6.0)
    v5 = v1 * v3 / 6.0
    mean = jnp.mean(v5, axis=(0, 2, 3), keepdims=True)
    var = jnp.mean((v5 - mean) ** 2, axis=(0, 2, 3), keepdims=True)
    v6 = (v5 - mean) / jnp.sqrt(var + 1e-5)
    return jnp.tanh(v6)


if __name__ == "__main__":
    key = jax.random.PRNGKey(0)
    kx, kw, kb = jax.random.split(key, 3)

    # Small shapes consistent with the module: N=2, Cin=3, spatial 16x16.
    x1 = jax.random.normal(kx, (2, 3, 16, 16), dtype=jnp.float32)

    # Conv2d(3, 100, 1): weight (100, 3, 1, 1), bias (100,), PyTorch-style init.
    fan_in = 3 * 1 * 1
    bound = 1.0 / (fan_in ** 0.5)
    w_conv = jax.random.uniform(kw, (100, 3, 1, 1), jnp.float32, -bound, bound)
    b_conv = jax.random.uniform(kb, (100,), jnp.float32, -bound, bound)

    ref = reference_forward(x1, w_conv, b_conv)

    # Default path: one full-dim HW tile per image.
    out = jax.jit(model_forward)(x1, w_conv, b_conv)
    jax.block_until_ready(out)
    assert out.shape == (2, 100, 18, 18), out.shape
    # One-pass (E[x^2]-mean^2) variance drifts by a few ulps vs the two-pass
    # reference; well inside 1e-4 on tanh outputs bounded in (-1, 1).
    assert jnp.allclose(out, ref, atol=1e-4, rtol=1e-4), float(
        jnp.max(jnp.abs(out - ref)))

    # Multi-tile path: exercises lane-dense tiling, the zero-padded input
    # tail, and the masked partial write of the last output block.
    out_tiled = jax.jit(
        functools.partial(model_forward, tile_hw=128))(x1, w_conv, b_conv)
    jax.block_until_ready(out_tiled)
    assert jnp.allclose(out_tiled, ref, atol=1e-4, rtol=1e-4), float(
        jnp.max(jnp.abs(out_tiled - ref)))

    # TODO(synk): BatchNorm running_mean/running_var state updates (a training
    # side effect) are not modeled; they do not affect the returned tensor.
    print("KERNEL_OK")
</pallas_src>

<mosaic_0001>
module attributes {stable_mosaic.version = 11 : i64} {
  func.func @_stats_kernel(%arg0: i32, %arg1: i32, %arg2: memref<1x8x324xf32, #tpu.memory_space<vmem>>, %arg3: memref<100x8xf32, #tpu.memory_space<vmem>>, %arg4: memref<1x100x2xf32, #tpu.memory_space<vmem>>) attributes {dimension_semantics = [#tpu.dimension_semantics<parallel>, #tpu.dimension_semantics<arbitrary>], iteration_bounds = array<i64: 2, 1>, scalar_prefetch = 0 : i64, scratch_operands = 0 : i64, tpu.core_type = #tpu.core_type<tc>, window_params = [{transform_indices = @transform_0, window_bounds = array<i64: 1, 8, 324>}, {pipeline_mode = #tpu.pipeline_mode<synchronous>, transform_indices = @transform_1, window_bounds = array<i64: 100, 8>}, {transform_indices = @transform_2, window_bounds = array<i64: 1, 100, 2>}]} {
    %c0_i32 = arith.constant 0 : i32
    %0 = arith.cmpi eq, %arg1, %c0_i32 : i32
    %1 = arith.extui %0 : i1 to i32
    %c0_i32_0 = arith.constant 0 : i32
    %2 = arith.cmpi ne, %1, %c0_i32_0 : i32
    scf.if %2 {
      %cst_22 = arith.constant 0.000000e+00 : f32
      %33 = vector.broadcast %cst_22 : f32 to vector<1x100x2xf32>
      %c0_23 = arith.constant 0 : index
      %c0_24 = arith.constant 0 : index
      %c0_25 = arith.constant 0 : index
      %34 = vector.load %arg4[%c0_23, %c0_24, %c0_25] : memref<1x100x2xf32, #tpu.memory_space<vmem>>, vector<1x100x2xf32>
      tpu.vector_store %arg4[%c0_23, %c0_24, %c0_25], %33 {strides = array<i32>} : memref<1x100x2xf32, #tpu.memory_space<vmem>>, vector<1x100x2xf32>,
    } else {
    }
    %c0 = arith.constant 0 : index
    %c0_1 = arith.constant 0 : index
    %3 = vector.load %arg3[%c0, %c0_1] : memref<100x8xf32, #tpu.memory_space<vmem>>, vector<100x8xf32>
    %c0_2 = arith.constant 0 : index
    %c0_3 = arith.constant 0 : index
    %c0_4 = arith.constant 0 : index
    %4 = vector.load %arg2[%c0_2, %c0_3, %c0_4] : memref<1x8x324xf32, #tpu.memory_space<vmem>>, vector<1x8x324xf32>
    %5 = vector.shape_cast %4 : vector<1x8x324xf32> to vector<8x324xf32>
    %cst = arith.constant dense<0.000000e+00> : vector<100x324xf32>
    %6 = tpu.matmul %3, %5, %cst {dimension_numbers = #tpu.dot_dimension_numbers<[1], [0], [0], [1], [0, 0, 1, 1], [], []>} : vector<100x8xf32>, vector<8x324xf32>, vector<100x324xf32> -> vector<100x324xf32>
    %cst_5 = arith.constant 3.000000e+00 : f32
    %7 = vector.broadcast %cst_5 : f32 to vector<100x324xf32>
    %8 = arith.addf %6, %7 : vector<100x324xf32>
    %cst_6 = arith.constant 0.000000e+00 : f32
    %cst_7 = arith.constant 6.000000e+00 : f32
    %9 = vector.broadcast %cst_6 : f32 to vector<100x324xf32>
    %10 = arith.maximumf %9, %8 : vector<100x324xf32>
    %11 = vector.broadcast %cst_7 : f32 to vector<100x324xf32>
    %12 = arith.minimumf %11, %10 : vector<100x324xf32>
    %13 = arith.mulf %6, %12 : vector<100x324xf32>
    %cst_8 = arith.constant 0.166666672 : f32
    %14 = vector.broadcast %cst_8 : f32 to vector<100x324xf32>
    %15 = arith.mulf %13, %14 : vector<100x324xf32>
    %c0_9 = arith.constant 0 : index
    %c0_10 = arith.constant 0 : index
    %c0_11 = arith.constant 0 : index
    %16 = vector.load %arg4[%c0_9, %c0_10, %c0_11] : memref<1x100x2xf32, #tpu.memory_space<vmem>>, vector<1x100x1xf32>
    %17 = vector.shape_cast %16 : vector<1x100x1xf32> to vector<100x1xf32>
    %cst_12 = arith.constant dense<0.000000e+00> : vector<100xf32>
    %18 = vector.multi_reduction <add>, %15, %cst_12 [1] : vector<100x324xf32> to vector<100xf32>
    %19 = vector.shape_cast %18 : vector<100xf32> to vector<100x1xf32>
    %20 = arith.addf %17, %19 : vector<100x1xf32>
    %c0_13 = arith.constant 0 : index
    %c0_14 = arith.constant 0 : index
    %c0_15 = arith.constant 0 : index
    %21 = vector.load %arg4[%c0_13, %c0_14, %c0_15] : memref<1x100x2xf32, #tpu.memory_space<vmem>>, vector<1x100x1xf32>
    %22 = vector.shape_cast %21 : vector<1x100x1xf32> to vector<100x1xf32>
    %23 = vector.shape_cast %20 : vector<100x1xf32> to vector<1x100x1xf32>
    tpu.vector_store %arg4[%c0_13, %c0_14, %c0_15], %23 {strides = array<i32>} : memref<1x100x2xf32, #tpu.memory_space<vmem>>, vector<1x100x1xf32>,
    %c0_16 = arith.constant 0 : index
    %c0_17 = arith.constant 0 : index
    %c1 = arith.constant 1 : index
    %24 = vector.load %arg4[%c0_16, %c0_17, %c1] : memref<1x100x2xf32, #tpu.memory_space<vmem>>, vector<1x100x1xf32>
    %25 = vector.shape_cast %24 : vector<1x100x1xf32> to vector<100x1xf32>
    %26 = arith.mulf %15, %15 : vector<100x324xf32>
    %cst_18 = arith.constant dense<0.000000e+00> : vector<100xf32>
    %27 = vector.multi_reduction <add>, %26, %cst_18 [1] : vector<100x324xf32> to vector<100xf32>
    %28 = vector.shape_cast %27 : vector<100xf32> to vector<100x1xf32>
    %29 = arith.addf %25, %28 : vector<100x1xf32>
    %c0_19 = arith.constant 0 : index
    %c0_20 = arith.constant 0 : index
    %c1_21 = arith.constant 1 : index
    %30 = vector.load %arg4[%c0_19, %c0_20, %c1_21] : memref<1x100x2xf32, #tpu.memory_space<vmem>>, vector<1x100x1xf32>
    %31 = vector.shape_cast %30 : vector<1x100x1xf32> to vector<100x1xf32>
    %32 = vector.shape_cast %29 : vector<100x1xf32> to vector<1x100x1xf32>
    tpu.vector_store %arg4[%c0_19, %c0_20, %c1_21], %32 {strides = array<i32>} : memref<1x100x2xf32, #tpu.memory_space<vmem>>, vector<1x100x1xf32>,
    return
  }
  func.func @transform_0(%arg0: i32, %arg1: i32) -> (i32, i32, i32) {
    %c0_i32 = arith.constant 0 : i32
    %c0_i32_0 = arith.constant 0 : i32
    return %arg0, %c0_i32, %arg1 : i32, i32, i32
  }
  func.func @transform_1(%arg0: i32, %arg1: i32) -> (i32, i32) {
    %c0_i32 = arith.constant 0 : i32
    %c0_i32_0 = arith.constant 0 : i32
    %c0_i32_1 = arith.constant 0 : i32
    return %c0_i32, %c0_i32_0 : i32, i32
  }
  func.func @transform_2(%arg0: i32, %arg1: i32) -> (i32, i32, i32) {
    %c0_i32 = arith.constant 0 : i32
    %c0_i32_0 = arith.constant 0 : i32
    %c0_i32_1 = arith.constant 0 : i32
    return %arg0, %c0_i32, %c0_i32_0 : i32, i32, i32
  }
}

module attributes {stable_mosaic.version = 11 : i64} {
  func.func @_normalize_kernel(%arg0: i32, %arg1: i32, %arg2: memref<1x8x324xf32, #tpu.memory_space<vmem>>, %arg3: memref<100x8xf32, #tpu.memory_space<vmem>>, %arg4: memref<2x100x2xf32, #tpu.memory_space<vmem>>, %arg5: memref<1x100x324xf32, #tpu.memory_space<vmem>>) attributes {dimension_semantics = [#tpu.dimension_semantics<parallel>, #tpu.dimension_semantics<parallel>], iteration_bounds = array<i64: 2, 1>, scalar_prefetch = 0 : i64, scratch_operands = 0 : i64, tpu.core_type = #tpu.core_type<tc>, window_params = [{transform_indices = @transform_0, window_bounds = array<i64: 1, 8, 324>}, {pipeline_mode = #tpu.pipeline_mode<synchronous>, transform_indices = @transform_1, window_bounds = array<i64: 100, 8>}, {pipeline_mode = #tpu.pipeline_mode<synchronous>, transform_indices = @transform_2, window_bounds = array<i64: 2, 100, 2>}, {transform_indices = @transform_3, window_bounds = array<i64: 1, 100, 324>}]} {
    %c0 = arith.constant 0 : index
    %c0_0 = arith.constant 0 : index
    %0 = vector.load %arg3[%c0, %c0_0] : memref<100x8xf32, #tpu.memory_space<vmem>>, vector<100x8xf32>
    %c0_1 = arith.constant 0 : index
    %c0_2 = arith.constant 0 : index
    %c0_3 = arith.constant 0 : index
    %1 = vector.load %arg2[%c0_1, %c0_2, %c0_3] : memref<1x8x324xf32, #tpu.memory_space<vmem>>, vector<1x8x324xf32>
    %2 = vector.shape_cast %1 : vector<1x8x324xf32> to vector<8x324xf32>
    %cst = arith.constant dense<0.000000e+00> : vector<100x324xf32>
    %3 = tpu.matmul %0, %2, %cst {dimension_numbers = #tpu.dot_dimension_numbers<[1], [0], [0], [1], [0, 0, 1, 1], [], []>} : vector<100x8xf32>, vector<8x324xf32>, vector<100x324xf32> -> vector<100x324xf32>
    %cst_4 = arith.constant 3.000000e+00 : f32
    %4 = vector.broadcast %cst_4 : f32 to vector<100x324xf32>
    %5 = arith.addf %3, %4 : vector<100x324xf32>
    %cst_5 = arith.constant 0.000000e+00 : f32
    %cst_6 = arith.constant 6.000000e+00 : f32
    %6 = vector.broadcast %cst_5 : f32 to vector<100x324xf32>
    %7 = arith.maximumf %6, %5 : vector<100x324xf32>
    %8 = vector.broadcast %cst_6 : f32 to vector<100x324xf32>
    %9 = arith.minimumf %8, %7 : vector<100x324xf32>
    %10 = arith.mulf %3, %9 : vector<100x324xf32>
    %cst_7 = arith.constant 0.166666672 : f32
    %11 = vector.broadcast %cst_7 : f32 to vector<100x324xf32>
    %12 = arith.mulf %10, %11 : vector<100x324xf32>
    %c0_8 = arith.constant 0 : index
    %c0_9 = arith.constant 0 : index
    %c0_10 = arith.constant 0 : index
    %13 = vector.load %arg4[%c0_8, %c0_9, %c0_10] : memref<2x100x2xf32, #tpu.memory_space<vmem>>, vector<2x100x2xf32>
    %cst_11 = arith.constant dense<0.000000e+00> : vector<100x2xf32>
    %14 = vector.multi_reduction <add>, %13, %cst_11 [0] : vector<2x100x2xf32> to vector<100x2xf32>
    %15 = vector.extract_strided_slice %14 {offsets = [0, 0], sizes = [100, 1], strides = [1, 1]} : vector<100x2xf32> to vector<100x1xf32>
    %cst_12 = arith.constant 0.00154320989 : f32
    %16 = vector.broadcast %cst_12 : f32 to vector<100x1xf32>
    %17 = arith.mulf %15, %16 : vector<100x1xf32>
    %18 = vector.extract_strided_slice %14 {offsets = [0, 1], sizes = [100, 1], strides = [1, 1]} : vector<100x2xf32> to vector<100x1xf32>
    %cst_13 = arith.constant 0.00154320989 : f32
    %19 = vector.broadcast %cst_13 : f32 to vector<100x1xf32>
    %20 = arith.mulf %18, %19 : vector<100x1xf32>
    %21 = arith.mulf %17, %17 : vector<100x1xf32>
    %22 = arith.subf %20, %21 : vector<100x1xf32>
    %cst_14 = arith.constant 0.000000e+00 : f32
    %23 = vector.broadcast %cst_14 : f32 to vector<100x1xf32>
    %24 = arith.maximumf %22, %23 : vector<100x1xf32>
    %cst_15 = arith.constant 9.99999974E-6 : f32
    %25 = vector.broadcast %cst_15 : f32 to vector<100x1xf32>
    %26 = arith.addf %24, %25 : vector<100x1xf32>
    %27 = math.rsqrt %26 : vector<100x1xf32>
    %28 = vector.broadcast %17 : vector<100x1xf32> to vector<100x324xf32>
    %29 = arith.subf %12, %28 : vector<100x324xf32>
    %30 = vector.broadcast %27 : vector<100x1xf32> to vector<100x324xf32>
    %31 = arith.mulf %29, %30 : vector<100x324xf32>
    %32 = math.tanh %31 : vector<100x324xf32>
    %c0_16 = arith.constant 0 : index
    %c0_17 = arith.constant 0 : index
    %c0_18 = arith.constant 0 : index
    %33 = vector.load %arg5[%c0_16, %c0_17, %c0_18] : memref<1x100x324xf32, #tpu.memory_space<vmem>>, vector<1x100x324xf32>
    %34 = vector.shape_cast %33 : vector<1x100x324xf32> to vector<100x324xf32>
    %35 = vector.shape_cast %32 : vector<100x324xf32> to vector<1x100x324xf32>
    tpu.vector_store %arg5[%c0_16, %c0_17, %c0_18], %35 {strides = array<i32>} : memref<1x100x324xf32, #tpu.memory_space<vmem>>, vector<1x100x324xf32>,
    return
  }
  func.func @transform_0(%arg0: i32, %arg1: i32) -> (i32, i32, i32) {
    %c0_i32 = arith.constant 0 : i32
    %c0_i32_0 = arith.constant 0 : i32
    return %arg0, %c0_i32, %arg1 : i32, i32, i32
  }
  func.func @transform_1(%arg0: i32, %arg1: i32) -> (i32, i32) {
    %c0_i32 = arith.constant 0 : i32
    %c0_i32_0 = arith.constant 0 : i32
    %c0_i32_1 = arith.constant 0 : i32
    return %c0_i32, %c0_i32_0 : i32, i32
  }
  func.func @transform_2(%arg0: i32, %arg1: i32) -> (i32, i32, i32) {
    %c0_i32 = arith.constant 0 : i32
    %c0_i32_0 = arith.constant 0 : i32
    %c0_i32_1 = arith.constant 0 : i32
    %c0_i32_2 = arith.constant 0 : i32
    return %c0_i32, %c0_i32_0, %c0_i32_1 : i32, i32, i32
  }
  func.func @transform_3(%arg0: i32, %arg1: i32) -> (i32, i32, i32) {
    %c0_i32 = arith.constant 0 : i32
    %c0_i32_0 = arith.constant 0 : i32
    return %arg0, %c0_i32, %arg1 : i32, i32, i32
  }
}

</mosaic_0001>

<llo_original>
// kernel: model_forward.3
$region0: #{model_forward.3}
  #allocation0 [shape = 'u32[]', space=smem, size = 0x4, offset = 0x4, fixed_abs, tag = 'smem constant byte address 0x4 - core index']
  #allocation1 [shape = 'u32[144,128]{1,0:T(1,128)}', space=vmem, size = 0x12000, scoped, tag = 'internal scratch']
  %s0 = inlined_call_operand.vmem [shape: f32[2,8,324], index: 0, kind: input, shape index: {}]
  %s1 = inlined_call_operand.vmem [shape: f32[100,8], index: 1, kind: input, shape index: {}]
  %s2 = inlined_call_operand.vmem [shape: f32[2,100,2], index: 2, kind: input, shape index: {}]
  %s3 = inlined_call_operand.vmem [shape: f32[2,100,324], index: 3, kind: output, shape index: {}]
  %s4 = sld [smem:[#allocation0]]
  $region45: #{model_forward.3} parent=0
    _
  %s6 = ssub.s32 1, %s4
  %s7 = scalar_select 0, %s6, %s4
  loop: start=0, step=1, limit=4
  $region2: #{model_forward.3} parent=0 // loop_pre_header
    _
  $region3: #{model_forward.3} parent=0 // loop_header
    %s9 = sphi 0, %s13
    %p10 = scmp.ge.s32.totalorder %s9, 4
    %s16 = sphi 0, %s28
    %s17 = sphi 0, %s24
    %s18 = sphi 0, %s16
    %s19 = sphi 0, %s17
    %s20 = sphi 0, %s18
    %s21 = sphi 0, %s19
    %s33 = sphi 0, %s35
    %s36 = sphi 0, %s33
    %s37 = sphi 0, %s36
    %s53 = sphi 0, %s37
    %s57 = sphi 0, %s57
    %s59 = sphi 0, %s57
    %s60 = sphi 0, %s59
    %s74 = sphi 0, %s60
    %s78 = sphi 0, %s78
    %s80 = sphi 0, %s78
    %s81 = sphi 0, %s80
    %s95 = sphi 0, %s81
    %s103 = sphi 0, %s105
    %s106 = sphi 0, %s103
    %s107 = sphi 0, %s106
    %s123 = sphi 0, %s107
  $region4: #{model_forward.3} parent=0 // loop_header_branch
    %12 = sbr.rel (%p10) target = $region8
  $region5: #{model_forward.3} parent=0 // loop_body
    %s14 = ssub.s32 %s9, 1
    %s15 = ssub.s32 %s9, 2
    %s22 = sadd.s32 1, %s17
    %p23 = scmp.ge.s32.totalorder %s22, 1
    %s24 = scalar_select %p23, 0, %s22
    %s25 = sadd.s32 1, %s16
    %s26 = scalar_select %p23, %s25, %s16
    %p27 = scmp.ge.s32.totalorder %s26, 2
    %s28 = scalar_select %p27, 0, %s26
    %s29 = ssub.s32 %s16, %s28
    %s30 = ssub.s32 %s17, %s24
    %s31 = sor.u32 %s29, %s30
    %p32 = scmp.eq.s32.totalorder %s31, 0
    %s34 = sadd.s32 %s33, 1
    %s35 = scalar_select %p32, %s33, %s34
    %p38 = pneg %p32
    %p39 = scmp.eq.s32.totalorder %s9, 1
    %p40 = por %p38, %p39
    %p41 = scmp.ne.s32.totalorder %s33, %s36
    %p42 = scmp.eq.s32.totalorder %s9, 0
    %p43 = por %p41, %p42
    %p44 = scmp.ne.s32.totalorder %s33, %s36
    %p45 = scmp.eq.s32.totalorder %s14, 1
    %p46 = por %p44, %p45
    %p47 = scmp.ne.s32.totalorder %s36, %s37
    %p48 = scmp.eq.s32.totalorder %s14, 0
    %p49 = por %p47, %p48
    %p50 = scmp.ne.s32.totalorder %s36, %s37
    %p51 = scmp.eq.s32.totalorder %s15, 1
    %p52 = por %p50, %p51
    %p54 = scmp.ne.s32.totalorder %s37, %s53
    %p55 = scmp.eq.s32.totalorder %s15, 0
    %p56 = por %p54, %p55
    %s58 = sadd.s32 %s57, 1
    %p61 = scmp.eq.s32.totalorder %s9, 1
    %p62 = scmp.ne.s32.totalorder %s57, %s59
    %p63 = scmp.eq.s32.totalorder %s9, 0
    %p64 = por %p62, %p63
    %p65 = scmp.ne.s32.totalorder %s57, %s59
    %p66 = scmp.eq.s32.totalorder %s14, 1
    %p67 = por %p65, %p66
    %p68 = scmp.ne.s32.totalorder %s59, %s60
    %p69 = scmp.eq.s32.totalorder %s14, 0
    %p70 = por %p68, %p69
    %p71 = scmp.ne.s32.totalorder %s59, %s60
    %p72 = scmp.eq.s32.totalorder %s15, 1
    %p73 = por %p71, %p72
    %p75 = scmp.ne.s32.totalorder %s60, %s74
    %p76 = scmp.eq.s32.totalorder %s15, 0
    %p77 = por %p75, %p76
    %s79 = sadd.s32 %s78, 1
    %p82 = scmp.eq.s32.totalorder %s9, 1
    %p83 = scmp.ne.s32.totalorder %s78, %s80
    %p84 = scmp.eq.s32.totalorder %s9, 0
    %p85 = por %p83, %p84
    %p86 = scmp.ne.s32.totalorder %s78, %s80
    %p87 = scmp.eq.s32.totalorder %s14, 1
    %p88 = por %p86, %p87
    %p89 = scmp.ne.s32.totalorder %s80, %s81
    %p90 = scmp.eq.s32.totalorder %s14, 0
    %p91 = por %p89, %p90
    %p92 = scmp.ne.s32.totalorder %s80, %s81
    %p93 = scmp.eq.s32.totalorder %s15, 1
    %p94 = por %p92, %p93
    %p96 = scmp.ne.s32.totalorder %s81, %s95
    %p97 = scmp.eq.s32.totalorder %s15, 0
    %p98 = por %p96, %p97
    %s99 = ssub.s32 %s16, %s28
    %s100 = ssub.s32 %s17, %s24
    %s101 = sor.u32 %s99, %s100
    %p102 = scmp.eq.s32.totalorder %s101, 0
    %s104 = sadd.s32 %s103, 1
    %s105 = scalar_select %p102, %s103, %s104
    %p108 = pneg %p102
    %p109 = scmp.eq.s32.totalorder %s9, 1
    %p110 = por %p108, %p109
    %p111 = scmp.ne.s32.totalorder %s103, %s106
    %p112 = scmp.eq.s32.totalorder %s9, 0
    %p113 = por %p111, %p112
    %p114 = scmp.ne.s32.totalorder %s103, %s106
    %p115 = scmp.eq.s32.totalorder %s14, 1
    %p116 = por %p114, %p115
    %p117 = scmp.ne.s32.totalorder %s106, %s107
    %p118 = scmp.eq.s32.totalorder %s14, 0
    %p119 = por %p117, %p118
    %p120 = scmp.ne.s32.totalorder %s106, %s107
    %p121 = scmp.eq.s32.totalorder %s15, 1
    %p122 = por %p120, %p121
    %p124 = scmp.ne.s32.totalorder %s107, %s123
    %p125 = scmp.eq.s32.totalorder %s15, 0
    %p126 = por %p124, %p125
    %p127 = scmp.le.s32.totalorder 1, %s9
    %p128 = scmp.lt.s32.totalorder %s9, 3
    %p129 = pnand %p127, %p128
    %p130 = pneg %p129
    // Predicated region
    $region9: #{model_forward.3} parent=5 // pred_check
      _
    $region10: #{model_forward.3} parent=5 // pred_check_branch
      %132 = sbr.rel (%p129) target = $region12
    $region11: #{model_forward.3} parent=5 // pred_region
      %s133 = ssub.s32 %s9, 1
      // Predicated region
      $region13: #{model_forward.3} parent=11 // pred_check
        %p134 = pneg %p70
      $region14: #{model_forward.3} parent=11 // pred_check_branch
        %136 = sbr.rel (%p134) target = $region16
      $region15: #{model_forward.3} parent=11 // pred_region
        _
      $region16: #{model_forward.3} parent=11 // pred_fallthru
        _
      // Predicated region
      $region17: #{model_forward.3} parent=11 // pred_check
        %p137 = pneg %p91
      $region18: #{model_forward.3} parent=11 // pred_check_branch
        %139 = sbr.rel (%p137) target = $region20
      $region19: #{model_forward.3} parent=11 // pred_region
        _
      $region20: #{model_forward.3} parent=11 // pred_fallthru
        _
    $region12: #{model_forward.3} parent=5 // pred_fallthru
      _
    %p140 = scmp.lt.s32.totalorder %s9, 2
    // Predicated region
    $region21: #{model_forward.3} parent=5 // pred_check
      %p141 = pneg %p140
    $region22: #{model_forward.3} parent=5 // pred_check_branch
      %143 = sbr.rel (%p141) target = $region24
    $region23: #{model_forward.3} parent=5 // pred_region
      // Predicated region
      $region25: #{model_forward.3} parent=23 // pred_check
        %p144 = pneg %p43
      $region26: #{model_forward.3} parent=23 // pred_check_branch
        %146 = sbr.rel (%p144) target = $region28
      $region27: #{model_forward.3} parent=23 // pred_region
        %s147 = smul.u32 3, %s17
        %p148 = scmp.lt.s32.totalorder %s16, 1
        %s149 = scalar_select %p148, %s16, 1
        %p150 = scmp.lt.s32.totalorder %s147, 2
        %s151 = scalar_select %p150, %s147, 2
        %s152 = smul.addr %s149, 3
        %s153 = sadd.s32 %s151, %s152
        %s154 = smul.addr %s153, 8
        %s155 = scalar_lea.vmem %s0, %s154
        %s156 = smul.u32 3, %s17
      $region28: #{model_forward.3} parent=23 // pred_fallthru
        _
    $region24: #{model_forward.3} parent=5 // pred_fallthru
      _
    %p157 = scmp.le.s32.totalorder 1, %s9
    %p158 = scmp.lt.s32.totalorder %s9, 3
    %p159 = pnand %p157, %p158
    %p160 = pneg %p159
    // Predicated region
    $region29: #{model_forward.3} parent=5 // pred_check
      _
    $region30: #{model_forward.3} parent=5 // pred_check_branch
      %162 = sbr.rel (%p159) target = $region32
    $region31: #{model_forward.3} parent=5 // pred_region
      %s163 = ssub.s32 %s9, 1
      %s164 = smul.u32 3, %s19
      %p165 = scmp.lt.s32.totalorder %s18, 1
      %s166 = scalar_select %p165, %s18, 1
      %p167 = scmp.lt.s32.totalorder %s164, 2
      %s168 = scalar_select %p167, %s164, 2
      %s169 = smul.addr %s166, 3
      %s170 = sadd.s32 %s168, %s169
      %s171 = smul.addr %s170, 8
      %s172 = scalar_lea.vmem %s0, %s171
      %p173 = pneg %p49
      %p174 = pneg %p46
      %p175 = pneg %p70
      %p176 = pneg %p67
      %p177 = pneg %p91
      %p178 = pneg %p88
      %p179 = pneg %p119
      %p180 = pneg %p116
      %s181 = smul.u32 3, %s19
      %p182 = scmp.lt.s32.totalorder %s18, 1
      %s183 = scalar_select %p182, %s18, 1
      %p184 = scmp.lt.s32.totalorder %s181, 2
      %s185 = scalar_select %p184, %s181, 2
      %s186 = smul.addr %s183, 39
      %s187 = sadd.s32 %s185, %s186
      %s188 = smul.addr %s187, 8
      %s189 = scalar_lea.vmem %s3, %s188
      %s190 = smul.u32 3, %s19
      %p191 = scmp.lt.s32.totalorder %s18, 1
      %s192 = scalar_select %p191, %s18, 1
      %p193 = scmp.lt.s32.totalorder %s190, 2
      %s194 = scalar_select %p193, %s190, 2
      %s195 = smul.addr %s192, 3
      %s196 = sadd.s32 %s194, %s195
      %s197 = smul.addr %s196, 8
      %s198 = scalar_lea.vmem %s0, %s197
      %s199 = smul.u32 3, %s19
      %s200 = smul.u32 3, %s19
      %p201 = scmp.lt.s32.totalorder %s18, 1
      %s202 = scalar_select %p201, %s18, 1
      %p203 = scmp.lt.s32.totalorder %s200, 2
      %s204 = scalar_select %p203, %s200, 2
      %s205 = smul.addr %s202, 39
      %s206 = sadd.s32 %s204, %s205
      %s207 = smul.addr %s206, 8
      %s208 = scalar_lea.vmem %s3, %s207
      %s209 = smul.u32 3, %s19
      %v210 = vld [vmem:[%s1] sm:$0xff]
      %v211 = vld [vmem:[%s1 + $0x8] sm:$0xff]
      %v212 = vld [vmem:[%s1 + $0x10] sm:$0xff]
      %v213 = vld [vmem:[%s1 + $0x18] sm:$0xff]
      %v214 = vld [vmem:[%s1 + $0x20] sm:$0xff]
      %v215 = vld [vmem:[%s1 + $0x28] sm:$0xff]
      %v216 = vld [vmem:[%s1 + $0x30] sm:$0xff]
      %v217 = vld [vmem:[%s1 + $0x38] sm:$0xff]
      %v218 = vld [vmem:[%s1 + $0x40] sm:$0xff]
      %v219 = vld [vmem:[%s1 + $0x48] sm:$0xff]
      %v220 = vld [vmem:[%s1 + $0x50] sm:$0xff]
      %v221 = vld [vmem:[%s1 + $0x58] sm:$0xff]
      %v222 = vld [vmem:[%s1 + $0x60] sm:$0xf]
      %v223 = vld [vmem:[%s198] sm:$0xff]
      %v224 = vld [vmem:[%s198 + $0x8] sm:$0xff]
      %v225 = vld [vmem:[%s198 + $0x10] sm:$0xff]
      %vm226 = vcmask 64512
      %v228 = vsel %vm226, %v210, 0
      %v231 = vsel %vm226, %v211, 0
      %v234 = vsel %vm226, %v212, 0
      %v237 = vsel %vm226, %v213, 0
      %v240 = vsel %vm226, %v214, 0
      %v243 = vsel %vm226, %v215, 0
      %v246 = vsel %vm226, %v216, 0
      %v249 = vsel %vm226, %v217, 0
      %v252 = vsel %vm226, %v218, 0
      %v255 = vsel %vm226, %v219, 0
      %v258 = vsel %vm226, %v220, 0
      %v261 = vsel %vm226, %v221, 0
      %v264 = vsel %vm226, %v222, 0
      %266 = vmatprep.subr.mxu0 %v224
      %267 = vmatpush1.msra.mxu0 %v223
      %268 = vmatprep.subr.mxu0 0.0
      %269 = vmatpush1.msra.mxu0 0.0
      %270 = vmatprep.subr.mxu0 0.0
      %271 = vmatpush1.msra.mxu0 0.0
      %272 = vmatprep.subr.mxu0 0.0
      %273 = vmatpush1.msra.mxu0 0.0
      %274 = vmatprep.subr.mxu0 0.0
      %275 = vmatpush1.msra.mxu0 0.0
      %276 = vmatprep.subr.mxu0 0.0
      %277 = vmatpush1.msra.mxu0 0.0
      %278 = vmatprep.subr.mxu0 0.0
      %279 = vmatpush1.msra.mxu0 0.0
      %280 = vmatprep.subr.mxu0 0.0
      %281 = vmatpush1.msra.mxu0 0.0
      %282 = vmatprep.subr.mxu0 0.0
      %283 = vmatpush1.msra.mxu0 0.0
      %284 = vmatprep.subr.mxu0 0.0
      %285 = vmatpush1.msra.mxu0 0.0
      %286 = vmatprep.subr.mxu0 0.0
      %287 = vmatpush1.msra.mxu0 0.0
      %288 = vmatprep.subr.mxu0 0.0
      %289 = vmatpush1.msra.mxu0 0.0
      %290 = vmatprep.subr.mxu0 0.0
      %291 = vmatpush1.msra.mxu0 0.0
      %292 = vmatprep.subr.mxu0 0.0
      %293 = vmatpush1.msra.mxu0 0.0
      %294 = vmatprep.subr.mxu0 0.0
      %295 = vmatpush1.msra.mxu0 0.0
      %296 = vmatprep.subr.mxu0 0.0
      %297 = vmatpush1.msra.mxu0 0.0
      %298 = vmatprep.subr.mxu0 0.0
      %299 = vmatpush1.msra.mxu0 0.0
      %300 = vmatprep.subr.mxu0 0.0
      %301 = vmatpush1.msra.mxu0 0.0
      %302 = vmatprep.subr.mxu0 0.0
      %303 = vmatpush1.msra.mxu0 0.0
      %304 = vmatprep.subr.mxu0 0.0
      %305 = vmatpush1.msra.mxu0 0.0
      %306 = vmatprep.subr.mxu0 0.0
      %307 = vmatpush1.msra.mxu0 0.0
      %308 = vmatprep.subr.mxu0 0.0
      %309 = vmatpush1.msra.mxu0 0.0
      %310 = vmatprep.subr.mxu0 0.0
      %311 = vmatpush1.msra.mxu0 0.0
      %312 = vmatprep.subr.mxu0 0.0
      %313 = vmatpush1.msra.mxu0 0.0
      %314 = vmatprep.subr.mxu0 0.0
      %315 = vmatpush1.msra.mxu0 0.0
      %316 = vmatprep.subr.mxu0 0.0
      %317 = vmatpush1.msra.mxu0 0.0
      %318 = vmatprep.subr.mxu0 0.0
      %319 = vmatpush1.msra.mxu0 0.0
      %320 = vmatprep.subr.mxu0 0.0
      %321 = vmatpush1.msra.mxu0 0.0
      %322 = vmatprep.subr.mxu0 0.0
      %323 = vmatpush1.msra.mxu0 0.0
      %324 = vmatprep.subr.mxu0 0.0
      %325 = vmatpush1.msra.mxu0 0.0
      %326 = vmatprep.subr.mxu0 0.0
      %327 = vmatpush1.msra.mxu0 0.0
      %328 = vmatprep.subr.mxu0 0.0
      %329 = vmatpush1.msra.mxu0 0.0
      %330 = vmatprep.mubr.f32.mxu0 0.0
      %331 = vmatmul.mubr.f32.gmra.mrb[0].mxu0 %v228
      %v332 = vpop.f32.mrb[0].mxu0
      %v333 = vadd.f32 0.0, %v332
      %v334 = vpop.f32.mrb[0].mxu0
      %v335 = vadd.f32 0.0, %v334
      %336 = vmatprep.mubr.f32.mxu0 0.0
      %337 = vmatmul.mubr.f32.gmra.mrb[0].mxu0 %v231
      %v338 = vpop.f32.mrb[0].mxu0
      %v339 = vadd.f32 0.0, %v338
      %v340 = vpop.f32.mrb[0].mxu0
      %v341 = vadd.f32 0.0, %v340
      %342 = vmatprep.mubr.f32.mxu0 0.0
      %343 = vmatmul.mubr.f32.gmra.mrb[0].mxu0 %v234
      %v344 = vpop.f32.mrb[0].mxu0
      %v345 = vadd.f32 0.0, %v344
      %v346 = vpop.f32.mrb[0].mxu0
      %v347 = vadd.f32 0.0, %v346
      %348 = vmatprep.mubr.f32.mxu0 0.0
      %349 = vmatmul.mubr.f32.gmra.mrb[0].mxu0 %v237
      %v350 = vpop.f32.mrb[0].mxu0
      %v351 = vadd.f32 0.0, %v350
      %v352 = vpop.f32.mrb[0].mxu0
      %v353 = vadd.f32 0.0, %v352
      %354 = vmatprep.mubr.f32.mxu0 0.0
      %355 = vmatmul.mubr.f32.gmra.mrb[0].mxu0 %v240
      %v356 = vpop.f32.mrb[0].mxu0
      %v357 = vadd.f32 0.0, %v356
      %v358 = vpop.f32.mrb[0].mxu0
      %v359 = vadd.f32 0.0, %v358
      %360 = vmatprep.mubr.f32.mxu0 0.0
      %361 = vmatmul.mubr.f32.gmra.mrb[0].mxu0 %v243
      %v362 = vpop.f32.mrb[0].mxu0
      %v363 = vadd.f32 0.0, %v362
      %v364 = vpop.f32.mrb[0].mxu0
      %v365 = vadd.f32 0.0, %v364
      %366 = vmatprep.mubr.f32.mxu0 0.0
      %367 = vmatmul.mubr.f32.gmra.mrb[0].mxu0 %v246
      %v368 = vpop.f32.mrb[0].mxu0
      %v369 = vadd.f32 0.0, %v368
      %v370 = vpop.f32.mrb[0].mxu0
      %v371 = vadd.f32 0.0, %v370
      %372 = vmatprep.mubr.f32.mxu0 0.0
      %373 = vmatmul.mubr.f32.gmra.mrb[0].mxu0 %v249
      %v374 = vpop.f32.mrb[0].mxu0
      %v375 = vadd.f32 0.0, %v374
      %v376 = vpop.f32.mrb[0].mxu0
      %v377 = vadd.f32 0.0, %v376
      %378 = vmatprep.mubr.f32.mxu0 0.0
      %379 = vmatmul.mubr.f32.gmra.mrb[0].mxu0 %v252
      %v380 = vpop.f32.mrb[0].mxu0
      %v381 = vadd.f32 0.0, %v380
      %v382 = vpop.f32.mrb[0].mxu0
      %v383 = vadd.f32 0.0, %v382
      %384 = vmatprep.mubr.f32.mxu0 0.0
      %385 = vmatmul.mubr.f32.gmra.mrb[0].mxu0 %v255
      %v386 = vpop.f32.mrb[0].mxu0
      %v387 = vadd.f32 0.0, %v386
      %v388 = vpop.f32.mrb[0].mxu0
      %v389 = vadd.f32 0.0, %v388
      %390 = vmatprep.mubr.f32.mxu0 0.0
      %391 = vmatmul.mubr.f32.gmra.mrb[0].mxu0 %v258
      %v392 = vpop.f32.mrb[0].mxu0
      %v393 = vadd.f32 0.0, %v392
      %v394 = vpop.f32.mrb[0].mxu0
      %v395 = vadd.f32 0.0, %v394
      %396 = vmatprep.mubr.f32.mxu0 0.0
      %397 = vmatmul.mubr.f32.gmra.mrb[0].mxu0 %v261
      %v398 = vpop.f32.mrb[0].mxu0
      %v399 = vadd.f32 0.0, %v398
      %v400 = vpop.f32.mrb[0].mxu0
      %v401 = vadd.f32 0.0, %v400
      %402 = vmatprep.mubr.f32.mxu0 0.0
      %403 = vmatmul.mubr.f32.gmra.mrb[0].mxu0 %v264
      %v404 = vpop.f32.mrb[0].mxu0
      %v405 = vadd.f32 0.0, %v404
      %v406 = vpop.f32.mrb[0].mxu0
      %v407 = vadd.f32 0.0, %v406
      %408 = vdwg.mxu0
      %409 = vmatprep.subr.mxu0 0.0
      %410 = vmatpush1.msra.mxu0 %v225
      %411 = vmatprep.subr.mxu0 0.0
      %412 = vmatpush1.msra.mxu0 0.0
      %413 = vmatprep.subr.mxu0 0.0
      %414 = vmatpush1.msra.mxu0 0.0
      %415 = vmatprep.subr.mxu0 0.0
      %416 = vmatpush1.msra.mxu0 0.0
      %417 = vmatprep.subr.mxu0 0.0
      %418 = vmatpush1.msra.mxu0 0.0
      %419 = vmatprep.subr.mxu0 0.0
      %420 = vmatpush1.msra.mxu0 0.0
      %421 = vmatprep.subr.mxu0 0.0
      %422 = vmatpush1.msra.mxu0 0.0
      %423 = vmatprep.subr.mxu0 0.0
      %424 = vmatpush1.msra.mxu0 0.0
      %425 = vmatprep.subr.mxu0 0.0
      %426 = vmatpush1.msra.mxu0 0.0
      %427 = vmatprep.subr.mxu0 0.0
      %428 = vmatpush1.msra.mxu0 0.0
      %429 = vmatprep.subr.mxu0 0.0
      %430 = vmatpush1.msra.mxu0 0.0
      %431 = vmatprep.subr.mxu0 0.0
      %432 = vmatpush1.msra.mxu0 0.0
      %433 = vmatprep.subr.mxu0 0.0
      %434 = vmatpush1.msra.mxu0 0.0
      %435 = vmatprep.subr.mxu0 0.0
      %436 = vmatpush1.msra.mxu0 0.0
      %437 = vmatprep.subr.mxu0 0.0
      %438 = vmatpush1.msra.mxu0 0.0
      %439 = vmatprep.subr.mxu0 0.0
      %440 = vmatpush1.msra.mxu0 0.0
      %441 = vmatprep.subr.mxu0 0.0
      %442 = vmatpush1.msra.mxu0 0.0
      %443 = vmatprep.subr.mxu0 0.0
      %444 = vmatpush1.msra.mxu0 0.0
      %445 = vmatprep.subr.mxu0 0.0
      %446 = vmatpush1.msra.mxu0 0.0
      %447 = vmatprep.subr.mxu0 0.0
      %448 = vmatpush1.msra.mxu0 0.0
      %449 = vmatprep.subr.mxu0 0.0
      %450 = vmatpush1.msra.mxu0 0.0
      %451 = vmatprep.subr.mxu0 0.0
      %452 = vmatpush1.msra.mxu0 0.0
      %453 = vmatprep.subr.mxu0 0.0
      %454 = vmatpush1.msra.mxu0 0.0
      %455 = vmatprep.subr.mxu0 0.0
      %456 = vmatpush1.msra.mxu0 0.0
      %457 = vmatprep.subr.mxu0 0.0
      %458 = vmatpush1.msra.mxu0 0.0
      %459 = vmatprep.subr.mxu0 0.0
      %460 = vmatpush1.msra.mxu0 0.0
      %461 = vmatprep.subr.mxu0 0.0
      %462 = vmatpush1.msra.mxu0 0.0
      %463 = vmatprep.subr.mxu0 0.0
      %464 = vmatpush1.msra.mxu0 0.0
      %465 = vmatprep.subr.mxu0 0.0
      %466 = vmatpush1.msra.mxu0 0.0
      %467 = vmatprep.subr.mxu0 0.0
      %468 = vmatpush1.msra.mxu0 0.0
      %469 = vmatprep.subr.mxu0 0.0
      %470 = vmatpush1.msra.mxu0 0.0
      %471 = vmatprep.subr.mxu0 0.0
      %472 = vmatpush1.msra.mxu0 0.0
      %473 = vmatprep.mubr.f32.mxu0 0.0
      %474 = vmatmul.mubr.f32.gmra.mrb[0].mxu0 %v228
      %v475 = vpop.f32.mrb[0].mxu0
      %v476 = vadd.f32 0.0, %v475
      %v477 = vpop.f32.mrb[0].mxu0
      %478 = vmatprep.mubr.f32.mxu0 0.0
      %479 = vmatmul.mubr.f32.gmra.mrb[0].mxu0 %v231
      %v480 = vpop.f32.mrb[0].mxu0
      %v481 = vadd.f32 0.0, %v480
      %v482 = vpop.f32.mrb[0].mxu0
      %483 = vmatprep.mubr.f32.mxu0 0.0
      %484 = vmatmul.mubr.f32.gmra.mrb[0].mxu0 %v234
      %v485 = vpop.f32.mrb[0].mxu0
      %v486 = vadd.f32 0.0, %v485
      %v487 = vpop.f32.mrb[0].mxu0
      %488 = vmatprep.mubr.f32.mxu0 0.0
      %489 = vmatmul.mubr.f32.gmra.mrb[0].mxu0 %v237
      %v490 = vpop.f32.mrb[0].mxu0
      %v491 = vadd.f32 0.0, %v490
      %v492 = vpop.f32.mrb[0].mxu0
      %493 = vmatprep.mubr.f32.mxu0 0.0
      %494 = vmatmul.mubr.f32.gmra.mrb[0].mxu0 %v240
      %v495 = vpop.f32.mrb[0].mxu0
      %v496 = vadd.f32 0.0, %v495
      %v497 = vpop.f32.mrb[0].mxu0
      %498 = vmatprep.mubr.f32.mxu0 0.0
      %499 = vmatmul.mubr.f32.gmra.mrb[0].mxu0 %v243
      %v500 = vpop.f32.mrb[0].mxu0
      %v501 = vadd.f32 0.0, %v500
      %v502 = vpop.f32.mrb[0].mxu0
      %503 = vmatprep.mubr.f32.mxu0 0.0
      %504 = vmatmul.mubr.f32.gmra.mrb[0].mxu0 %v246
      %v505 = vpop.f32.mrb[0].mxu0
      %v506 = vadd.f32 0.0, %v505
      %v507 = vpop.f32.mrb[0].mxu0
      %508 = vmatprep.mubr.f32.mxu0 0.0
      %509 = vmatmul.mubr.f32.gmra.mrb[0].mxu0 %v249
      %v510 = vpop.f32.mrb[0].mxu0
      %v511 = vadd.f32 0.0, %v510
      %v512 = vpop.f32.mrb[0].mxu0
      %513 = vmatprep.mubr.f32.mxu0 0.0
      %514 = vmatmul.mubr.f32.gmra.mrb[0].mxu0 %v252
      %v515 = vpop.f32.mrb[0].mxu0
      %v516 = vadd.f32 0.0, %v515
      %v517 = vpop.f32.mrb[0].mxu0
      %518 = vmatprep.mubr.f32.mxu0 0.0
      %519 = vmatmul.mubr.f32.gmra.mrb[0].mxu0 %v255
      %v520 = vpop.f32.mrb[0].mxu0
      %v521 = vadd.f32 0.0, %v520
      %v522 = vpop.f32.mrb[0].mxu0
      %523 = vmatprep.mubr.f32.mxu0 0.0
      %524 = vmatmul.mubr.f32.gmra.mrb[0].mxu0 %v258
      %v525 = vpop.f32.mrb[0].mxu0
      %v526 = vadd.f32 0.0, %v525
      %v527 = vpop.f32.mrb[0].mxu0
      %528 = vmatprep.mubr.f32.mxu0 0.0
      %529 = vmatmul.mubr.f32.gmra.mrb[0].mxu0 %v261
      %v530 = vpop.f32.mrb[0].mxu0
      %v531 = vadd.f32 0.0, %v530
      %v532 = vpop.f32.mrb[0].mxu0
      %533 = vmatprep.mubr.f32.mxu0 0.0
      %534 = vmatmul.mubr.f32.gmra.mrb[0].mxu0 %v264
      %v535 = vpop.f32.mrb[0].mxu0
      %v536 = vadd.f32 0.0, %v535
      %v537 = vpop.f32.mrb[0].mxu0
      %538 = vdwg.mxu0
      %v539 = vadd.f32 %v333, 3.0
      %v540 = vadd.f32 %v335, 3.0
      %v541 = vadd.f32 %v476, 3.0
      %v542 = vadd.f32 %v339, 3.0
      %v543 = vadd.f32 %v341, 3.0
      %v544 = vadd.f32 %v481, 3.0
      %v545 = vadd.f32 %v345, 3.0
      %v546 = vadd.f32 %v347, 3.0
      %v547 = vadd.f32 %v486, 3.0
      %v548 = vadd.f32 %v351, 3.0
      %v549 = vadd.f32 %v353, 3.0
      %v550 = vadd.f32 %v491, 3.0
      %v551 = vadd.f32 %v357, 3.0
      %v552 = vadd.f32 %v359, 3.0
      %v553 = vadd.f32 %v496, 3.0
      %v554 = vadd.f32 %v363, 3.0
      %v555 = vadd.f32 %v365, 3.0
      %v556 = vadd.f32 %v501, 3.0
      %v557 = vadd.f32 %v369, 3.0
      %v558 = vadd.f32 %v371, 3.0
      %v559 = vadd.f32 %v506, 3.0
      %v560 = vadd.f32 %v375, 3.0
      %v561 = vadd.f32 %v377, 3.0
      %v562 = vadd.f32 %v511, 3.0
      %v563 = vadd.f32 %v381, 3.0
      %v564 = vadd.f32 %v383, 3.0
      %v565 = vadd.f32 %v516, 3.0
      %v566 = vadd.f32 %v387, 3.0
      %v567 = vadd.f32 %v389, 3.0
      %v568 = vadd.f32 %v521, 3.0
      %v569 = vadd.f32 %v393, 3.0
      %v570 = vadd.f32 %v395, 3.0
      %v571 = vadd.f32 %v526, 3.0
      %v572 = vadd.f32 %v399, 3.0
      %v573 = vadd.f32 %v401, 3.0
      %v574 = vadd.f32 %v531, 3.0
      %v575 = vadd.f32 %v405, 3.0
      %v576 = vadd.f32 %v407, 3.0
      %v577 = vadd.f32 %v536, 3.0
      %v578 = vmax.f32 %v539, 0.0
      %v579 = vmax.f32 %v540, 0.0
      %v580 = vmax.f32 %v541, 0.0
      %v581 = vmax.f32 %v542, 0.0
      %v582 = vmax.f32 %v543, 0.0
      %v583 = vmax.f32 %v544, 0.0
      %v584 = vmax.f32 %v545, 0.0
      %v585 = vmax.f32 %v546, 0.0
      %v586 = vmax.f32 %v547, 0.0
      %v587 = vmax.f32 %v548, 0.0
      %v588 = vmax.f32 %v549, 0.0
      %v589 = vmax.f32 %v550, 0.0
      %v590 = vmax.f32 %v551, 0.0
      %v591 = vmax.f32 %v552, 0.0
      %v592 = vmax.f32 %v553, 0.0
      %v593 = vmax.f32 %v554, 0.0
      %v594 = vmax.f32 %v555, 0.0
      %v595 = vmax.f32 %v556, 0.0
      %v596 = vmax.f32 %v557, 0.0
      %v597 = vmax.f32 %v558, 0.0
      %v598 = vmax.f32 %v559, 0.0
      %v599 = vmax.f32 %v560, 0.0
      %v600 = vmax.f32 %v561, 0.0
      %v601 = vmax.f32 %v562, 0.0
      %v602 = vmax.f32 %v563, 0.0
      %v603 = vmax.f32 %v564, 0.0
      %v604 = vmax.f32 %v565, 0.0
      %v605 = vmax.f32 %v566, 0.0
      %v606 = vmax.f32 %v567, 0.0
      %v607 = vmax.f32 %v568, 0.0
      %v608 = vmax.f32 %v569, 0.0
      %v609 = vmax.f32 %v570, 0.0
      %v610 = vmax.f32 %v571, 0.0
      %v611 = vmax.f32 %v572, 0.0
      %v612 = vmax.f32 %v573, 0.0
      %v613 = vmax.f32 %v574, 0.0
      %v614 = vmax.f32 %v575, 0.0
      %v615 = vmax.f32 %v576, 0.0
      %v616 = vmax.f32 %v577, 0.0
      %v617 = vmin.f32 %v578, 6.0
      %v618 = vmin.f32 %v579, 6.0
      %v619 = vmin.f32 %v580, 6.0
      %v620 = vmin.f32 %v581, 6.0
      %v621 = vmin.f32 %v582, 6.0
      %v622 = vmin.f32 %v583, 6.0
      %v623 = vmin.f32 %v584, 6.0
      %v624 = vmin.f32 %v585, 6.0
      %v625 = vmin.f32 %v586, 6.0
      %v626 = vmin.f32 %v587, 6.0
      %v627 = vmin.f32 %v588, 6.0
      %v628 = vmin.f32 %v589, 6.0
      %v629 = vmin.f32 %v590, 6.0
      %v630 = vmin.f32 %v591, 6.0
      %v631 = vmin.f32 %v592, 6.0
      %v632 = vmin.f32 %v593, 6.0
      %v633 = vmin.f32 %v594, 6.0
      %v634 = vmin.f32 %v595, 6.0
      %v635 = vmin.f32 %v596, 6.0
      %v636 = vmin.f32 %v597, 6.0
      %v637 = vmin.f32 %v598, 6.0
      %v638 = vmin.f32 %v599, 6.0
      %v639 = vmin.f32 %v600, 6.0
      %v640 = vmin.f32 %v601, 6.0
      %v641 = vmin.f32 %v602, 6.0
      %v642 = vmin.f32 %v603, 6.0
      %v643 = vmin.f32 %v604, 6.0
      %v644 = vmin.f32 %v605, 6.0
      %v645 = vmin.f32 %v606, 6.0
      %v646 = vmin.f32 %v607, 6.0
      %v647 = vmin.f32 %v608, 6.0
      %v648 = vmin.f32 %v609, 6.0
      %v649 = vmin.f32 %v610, 6.0
      %v650 = vmin.f32 %v611, 6.0
      %v651 = vmin.f32 %v612, 6.0
      %v652 = vmin.f32 %v613, 6.0
      %v653 = vmin.f32 %v614, 6.0
      %v654 = vmin.f32 %v615, 6.0
      %v655 = vmin.f32 %v616, 6.0
      %v656 = vmul.f32 %v333, %v617
      %v657 = vmul.f32 %v335, %v618
      %v658 = vmul.f32 %v476, %v619
      %v659 = vmul.f32 %v339, %v620
      %v660 = vmul.f32 %v341, %v621
      %v661 = vmul.f32 %v481, %v622
      %v662 = vmul.f32 %v345, %v623
      %v663 = vmul.f32 %v347, %v624
      %v664 = vmul.f32 %v486, %v625
      %v665 = vmul.f32 %v351, %v626
      %v666 = vmul.f32 %v353, %v627
      %v667 = vmul.f32 %v491, %v628
      %v668 = vmul.f32 %v357, %v629
      %v669 = vmul.f32 %v359, %v630
      %v670 = vmul.f32 %v496, %v631
      %v671 = vmul.f32 %v363, %v632
      %v672 = vmul.f32 %v365, %v633
      %v673 = vmul.f32 %v501, %v634
      %v674 = vmul.f32 %v369, %v635
      %v675 = vmul.f32 %v371, %v636
      %v676 = vmul.f32 %v506, %v637
      %v677 = vmul.f32 %v375, %v638
      %v678 = vmul.f32 %v377, %v639
      %v679 = vmul.f32 %v511, %v640
      %v680 = vmul.f32 %v381, %v641
      %v681 = vmul.f32 %v383, %v642
      %v682 = vmul.f32 %v516, %v643
      %v683 = vmul.f32 %v387, %v644
      %v684 = vmul.f32 %v389, %v645
      %v685 = vmul.f32 %v521, %v646
      %v686 = vmul.f32 %v393, %v647
      %v687 = vmul.f32 %v395, %v648
      %v688 = vmul.f32 %v526, %v649
      %v689 = vmul.f32 %v399, %v650
      %v690 = vmul.f32 %v401, %v651
      %v691 = vmul.f32 %v531, %v652
      %v692 = vmul.f32 %v405, %v653
      %v693 = vmul.f32 %v407, %v654
      %v694 = vmul.f32 %v536, %v655
      %v695 = vmul.f32 %v656, 0.16666667
      %v696 = vmul.f32 %v657, 0.16666667
      %v697 = vmul.f32 %v658, 0.16666667
      %v698 = vmul.f32 %v659, 0.16666667
      %v699 = vmul.f32 %v660, 0.16666667
      %v700 = vmul.f32 %v661, 0.16666667
      %v701 = vmul.f32 %v662, 0.16666667
      %v702 = vmul.f32 %v663, 0.16666667
      %v703 = vmul.f32 %v664, 0.16666667
      %v704 = vmul.f32 %v665, 0.16666667
      %v705 = vmul.f32 %v666, 0.16666667
      %v706 = vmul.f32 %v667, 0.16666667
      %v707 = vmul.f32 %v668, 0.16666667
      %v708 = vmul.f32 %v669, 0.16666667
      %v709 = vmul.f32 %v670, 0.16666667
      %v710 = vmul.f32 %v671, 0.16666667
      %v711 = vmul.f32 %v672, 0.16666667
      %v712 = vmul.f32 %v673, 0.16666667
      %v713 = vmul.f32 %v674, 0.16666667
      %v714 = vmul.f32 %v675, 0.16666667
      %v715 = vmul.f32 %v676, 0.16666667
      %v716 = vmul.f32 %v677, 0.16666667
      %v717 = vmul.f32 %v678, 0.16666667
      %v718 = vmul.f32 %v679, 0.16666667
      %v719 = vmul.f32 %v680, 0.16666667
      %v720 = vmul.f32 %v681, 0.16666667
      %v721 = vmul.f32 %v682, 0.16666667
      %v722 = vmul.f32 %v683, 0.16666667
      %v723 = vmul.f32 %v684, 0.16666667
      %v724 = vmul.f32 %v685, 0.16666667
      %v725 = vmul.f32 %v686, 0.16666667
      %v726 = vmul.f32 %v687, 0.16666667
      %v727 = vmul.f32 %v688, 0.16666667
      %v728 = vmul.f32 %v689, 0.16666667
      %v729 = vmul.f32 %v690, 0.16666667
      %v730 = vmul.f32 %v691, 0.16666667
      %v731 = vmul.f32 %v692, 0.16666667
      %v732 = vmul.f32 %v693, 0.16666667
      %v733 = vmul.f32 %v694, 0.16666667
      %v734 = vld [vmem:[%s2] sm:$0xff]
      %v735 = vld [vmem:[%s2 + $0x8] sm:$0xff]
      %v736 = vld [vmem:[%s2 + $0x10] sm:$0xff]
      %v737 = vld [vmem:[%s2 + $0x18] sm:$0xff]
      %v738 = vld [vmem:[%s2 + $0x20] sm:$0xff]
      %v739 = vld [vmem:[%s2 + $0x28] sm:$0xff]
      %v740 = vld [vmem:[%s2 + $0x30] sm:$0xff]
      %v741 = vld [vmem:[%s2 + $0x38] sm:$0xff]
      %v742 = vld [vmem:[%s2 + $0x40] sm:$0xff]
      %v743 = vld [vmem:[%s2 + $0x48] sm:$0xff]
      %v744 = vld [vmem:[%s2 + $0x50] sm:$0xff]
      %v745 = vld [vmem:[%s2 + $0x58] sm:$0xff]
      %v746 = vld [vmem:[%s2 + $0x60] sm:$0xf]
      %v747 = vld [vmem:[%s2 + $0x68] sm:$0xff]
      %v748 = vld [vmem:[%s2 + $0x70] sm:$0xff]
      %v749 = vld [vmem:[%s2 + $0x78] sm:$0xff]
      %v750 = vld [vmem:[%s2 + $0x80] sm:$0xff]
      %v751 = vld [vmem:[%s2 + $0x88] sm:$0xff]
      %v752 = vld [vmem:[%s2 + $0x90] sm:$0xff]
      %v753 = vld [vmem:[%s2 + $0x98] sm:$0xff]
      %v754 = vld [vmem:[%s2 + $0xa0] sm:$0xff]
      %v755 = vld [vmem:[%s2 + $0xa8] sm:$0xff]
      %v756 = vld [vmem:[%s2 + $0xb0] sm:$0xff]
      %v757 = vld [vmem:[%s2 + $0xb8] sm:$0xff]
      %v758 = vld [vmem:[%s2 + $0xc0] sm:$0xff]
      %v759 = vld [vmem:[%s2 + $0xc8] sm:$0xf]
      %vm760 = vcmask 15360
      %v761 = vsel %vm760, %v734, 0.0
      %v762 = vsel %vm760, %v747, 0.0
      %v763 = vadd.f32 %v761, %v762
      %v764 = vsel %vm760, %v735, 0.0
      %v765 = vsel %vm760, %v748, 0.0
      %v766 = vadd.f32 %v764, %v765
      %v767 = vsel %vm760, %v736, 0.0
      %v768 = vsel %vm760, %v749, 0.0
      %v769 = vadd.f32 %v767, %v768
      %v770 = vsel %vm760, %v737, 0.0
      %v771 = vsel %vm760, %v750, 0.0
      %v772 = vadd.f32 %v770, %v771
      %v773 = vsel %vm760, %v738, 0.0
      %v774 = vsel %vm760, %v751, 0.0
      %v775 = vadd.f32 %v773, %v774
      %v776 = vsel %vm760, %v739, 0.0
      %v777 = vsel %vm760, %v752, 0.0
      %v778 = vadd.f32 %v776, %v777
      %v779 = vsel %vm760, %v740, 0.0
      %v780 = vsel %vm760, %v753, 0.0
      %v781 = vadd.f32 %v779, %v780
      %v782 = vsel %vm760, %v741, 0.0
      %v783 = vsel %vm760, %v754, 0.0
      %v784 = vadd.f32 %v782, %v783
      %v785 = vsel %vm760, %v742, 0.0
      %v786 = vsel %vm760, %v755, 0.0
      %v787 = vadd.f32 %v785, %v786
      %v788 = vsel %vm760, %v743, 0.0
      %v789 = vsel %vm760, %v756, 0.0
      %v790 = vadd.f32 %v788, %v789
      %v791 = vsel %vm760, %v744, 0.0
      %v792 = vsel %vm760, %v757, 0.0
      %v793 = vadd.f32 %v791, %v792
      %v794 = vsel %vm760, %v745, 0.0
      %v795 = vsel %vm760, %v758, 0.0
      %v796 = vadd.f32 %v794, %v795
      %vm797 = vcmask 11264
      %v798 = vsel %vm797, %v746, 0.0
      %v799 = vsel %vm797, %v759, 0.0
      %v800 = vadd.f32 %v798, %v799
      %v801 = vmul.f32 %v763, 0.0015432099
      %v802 = vmul.f32 %v766, 0.0015432099
      %v803 = vmul.f32 %v769, 0.0015432099
      %v804 = vmul.f32 %v772, 0.0015432099
      %v805 = vmul.f32 %v775, 0.0015432099
      %v806 = vmul.f32 %v778, 0.0015432099
      %v807 = vmul.f32 %v781, 0.0015432099
      %v808 = vmul.f32 %v784, 0.0015432099
      %v809 = vmul.f32 %v787, 0.0015432099
      %v810 = vmul.f32 %v790, 0.0015432099
      %v811 = vmul.f32 %v793, 0.0015432099
      %v812 = vmul.f32 %v796, 0.0015432099
      %v813 = vmul.f32 %v800, 0.0015432099
      %v814 = vmul.f32 %v801, %v801
      %v815 = vmul.f32 %v802, %v802
      %v816 = vmul.f32 %v803, %v803
      %v817 = vmul.f32 %v804, %v804
      %v818 = vmul.f32 %v805, %v805
      %v819 = vmul.f32 %v806, %v806
      %v820 = vmul.f32 %v807, %v807
      %v821 = vmul.f32 %v808, %v808
      %v822 = vmul.f32 %v809, %v809
      %v823 = vmul.f32 %v810, %v810
      %v824 = vmul.f32 %v811, %v811
      %v825 = vmul.f32 %v812, %v812
      %v826 = vmul.f32 %v813, %v813
      %840 = vrot.lane.b32.xlu0 %v814, 1
      %v841 = vpop.permute.xlu0 %840
      %842 = vrot.lane.b32.xlu0 %v815, 1
      %v843 = vpop.permute.xlu0 %842
      %844 = vrot.lane.b32.xlu0 %v816, 1
      %v845 = vpop.permute.xlu0 %844
      %846 = vrot.lane.b32.xlu0 %v817, 1
      %v847 = vpop.permute.xlu0 %846
      %848 = vrot.lane.b32.xlu0 %v818, 1
      %v849 = vpop.permute.xlu0 %848
      %850 = vrot.lane.b32.xlu0 %v819, 1
      %v851 = vpop.permute.xlu0 %850
      %852 = vrot.lane.b32.xlu0 %v820, 1
      %v853 = vpop.permute.xlu0 %852
      %854 = vrot.lane.b32.xlu0 %v821, 1
      %v855 = vpop.permute.xlu0 %854
      %856 = vrot.lane.b32.xlu0 %v822, 1
      %v857 = vpop.permute.xlu0 %856
      %858 = vrot.lane.b32.xlu0 %v823, 1
      %v859 = vpop.permute.xlu0 %858
      %860 = vrot.lane.b32.xlu0 %v824, 1
      %v861 = vpop.permute.xlu0 %860
      %862 = vrot.lane.b32.xlu0 %v825, 1
      %v863 = vpop.permute.xlu0 %862
      %864 = vrot.lane.b32.xlu0 %v826, 1
      %v865 = vpop.permute.xlu0 %864
      %v879 = vsub.f32 %v801, %v841
      %v880 = vsub.f32 %v802, %v843
      %v881 = vsub.f32 %v803, %v845
      %v882 = vsub.f32 %v804, %v847
      %v883 = vsub.f32 %v805, %v849
      %v884 = vsub.f32 %v806, %v851
      %v885 = vsub.f32 %v807, %v853
      %v886 = vsub.f32 %v808, %v855
      %v887 = vsub.f32 %v809, %v857
      %v888 = vsub.f32 %v810, %v859
      %v889 = vsub.f32 %v811, %v861
      %v890 = vsub.f32 %v812, %v863
      %v891 = vsub.f32 %v813, %v865
      %v892 = vmax.f32 %v879, 0.0
      %v893 = vmax.f32 %v880, 0.0
      %v894 = vmax.f32 %v881, 0.0
      %v895 = vmax.f32 %v882, 0.0
      %v896 = vmax.f32 %v883, 0.0
      %v897 = vmax.f32 %v884, 0.0
      %v898 = vmax.f32 %v885, 0.0
      %v899 = vmax.f32 %v886, 0.0
      %v900 = vmax.f32 %v887, 0.0
      %v901 = vmax.f32 %v888, 0.0
      %v902 = vmax.f32 %v889, 0.0
      %v903 = vmax.f32 %v890, 0.0
      %v904 = vmax.f32 %v891, 0.0
      %v905 = vadd.f32 %v892, 1e-05
      %v906 = vadd.f32 %v893, 1e-05
      %v907 = vadd.f32 %v894, 1e-05
      %v908 = vadd.f32 %v895, 1e-05
      %v909 = vadd.f32 %v896, 1e-05
      %v910 = vadd.f32 %v897, 1e-05
      %v911 = vadd.f32 %v898, 1e-05
      %v912 = vadd.f32 %v899, 1e-05
      %v913 = vadd.f32 %v900, 1e-05
      %v914 = vadd.f32 %v901, 1e-05
      %v915 = vadd.f32 %v902, 1e-05
      %v916 = vadd.f32 %v903, 1e-05
      %v917 = vadd.f32 %v904, 1e-05
      %v918 = vrsqrt.pop %v905
      %v919 = vrsqrt.pop %v906
      %v920 = vrsqrt.pop %v907
      %v921 = vrsqrt.pop %v908
      %v922 = vrsqrt.pop %v909
      %v923 = vrsqrt.pop %v910
      %v924 = vrsqrt.pop %v911
      %v925 = vrsqrt.pop %v912
      %v926 = vrsqrt.pop %v913
      %v927 = vrsqrt.pop %v914
      %v928 = vrsqrt.pop %v915
      %v929 = vrsqrt.pop %v916
      %v930 = vrsqrt.pop %v917
      %932 = vset.pattern.permute.xlu0 0
      %933 = vperm.xlu0 %932, %v801
      %v934 = vpop.permute.xlu0 %933
      %937 = vset.pattern.permute.xlu0 0
      %938 = vperm.xlu0 %937, %v802
      %v939 = vpop.permute.xlu0 %938
      %942 = vset.pattern.permute.xlu0 0
      %943 = vperm.xlu0 %942, %v803
      %v944 = vpop.permute.xlu0 %943
      %947 = vset.pattern.permute.xlu0 0
      %948 = vperm.xlu0 %947, %v804
      %v949 = vpop.permute.xlu0 %948
      %952 = vset.pattern.permute.xlu0 0
      %953 = vperm.xlu0 %952, %v805
      %v954 = vpop.permute.xlu0 %953
      %957 = vset.pattern.permute.xlu0 0
      %958 = vperm.xlu0 %957, %v806
      %v959 = vpop.permute.xlu0 %958
      %962 = vset.pattern.permute.xlu0 0
      %963 = vperm.xlu0 %962, %v807
      %v964 = vpop.permute.xlu0 %963
      %967 = vset.pattern.permute.xlu0 0
      %968 = vperm.xlu0 %967, %v808
      %v969 = vpop.permute.xlu0 %968
      %972 = vset.pattern.permute.xlu0 0
      %973 = vperm.xlu0 %972, %v809
      %v974 = vpop.permute.xlu0 %973
      %977 = vset.pattern.permute.xlu0 0
      %978 = vperm.xlu0 %977, %v810
      %v979 = vpop.permute.xlu0 %978
      %982 = vset.pattern.permute.xlu0 0
      %983 = vperm.xlu0 %982, %v811
      %v984 = vpop.permute.xlu0 %983
      %987 = vset.pattern.permute.xlu0 0
      %988 = vperm.xlu0 %987, %v812
      %v989 = vpop.permute.xlu0 %988
      %992 = vset.pattern.permute.xlu0 0
      %993 = vperm.xlu0 %992, %v813
      %v994 = vpop.permute.xlu0 %993
      %v996 = vsub.f32 %v695, %v934
      %v997 = vsub.f32 %v696, %v934
      %v998 = vsub.f32 %v697, %v934
      %v999 = vsub.f32 %v698, %v939
      %v1000 = vsub.f32 %v699, %v939
      %v1001 = vsub.f32 %v700, %v939
      %v1002 = vsub.f32 %v701, %v944
      %v1003 = vsub.f32 %v702, %v944
      %v1004 = vsub.f32 %v703, %v944
      %v1005 = vsub.f32 %v704, %v949
      %v1006 = vsub.f32 %v705, %v949
      %v1007 = vsub.f32 %v706, %v949
      %v1008 = vsub.f32 %v707, %v954
      %v1009 = vsub.f32 %v708, %v954
      %v1010 = vsub.f32 %v709, %v954
      %v1011 = vsub.f32 %v710, %v959
      %v1012 = vsub.f32 %v711, %v959
      %v1013 = vsub.f32 %v712, %v959
      %v1014 = vsub.f32 %v713, %v964
      %v1015 = vsub.f32 %v714, %v964
      %v1016 = vsub.f32 %v715, %v964
      %v1017 = vsub.f32 %v716, %v969
      %v1018 = vsub.f32 %v717, %v969
      %v1019 = vsub.f32 %v718, %v969
      %v1020 = vsub.f32 %v719, %v974
      %v1021 = vsub.f32 %v720, %v974
      %v1022 = vsub.f32 %v721, %v974
      %v1023 = vsub.f32 %v722, %v979
      %v1024 = vsub.f32 %v723, %v979
      %v1025 = vsub.f32 %v724, %v979
      %v1026 = vsub.f32 %v725, %v984
      %v1027 = vsub.f32 %v726, %v984
      %v1028 = vsub.f32 %v727, %v984
      %v1029 = vsub.f32 %v728, %v989
      %v1030 = vsub.f32 %v729, %v989
      %v1031 = vsub.f32 %v730, %v989
      %v1032 = vsub.f32 %v731, %v994
      %v1033 = vsub.f32 %v732, %v994
      %v1034 = vsub.f32 %v733, %v994
      %1036 = vset.pattern.permute.xlu0 1
      %1037 = vperm.xlu0 %1036, %v918
      %v1038 = vpop.permute.xlu0 %1037
      %1041 = vset.pattern.permute.xlu0 1
      %1042 = vperm.xlu0 %1041, %v919
      %v1043 = vpop.permute.xlu0 %1042
      %1046 = vset.pattern.permute.xlu0 1
      %1047 = vperm.xlu0 %1046, %v920
      %v1048 = vpop.permute.xlu0 %1047
      %1051 = vset.pattern.permute.xlu0 1
      %1052 = vperm.xlu0 %1051, %v921
      %v1053 = vpop.permute.xlu0 %1052
      %1056 = vset.pattern.permute.xlu0 1
      %1057 = vperm.xlu0 %1056, %v922
      %v1058 = vpop.permute.xlu0 %1057
      %1061 = vset.pattern.permute.xlu0 1
      %1062 = vperm.xlu0 %1061, %v923
      %v1063 = vpop.permute.xlu0 %1062
      %1066 = vset.pattern.permute.xlu0 1
      %1067 = vperm.xlu0 %1066, %v924
      %v1068 = vpop.permute.xlu0 %1067
      %1071 = vset.pattern.permute.xlu0 1
      %1072 = vperm.xlu0 %1071, %v925
      %v1073 = vpop.permute.xlu0 %1072
      %1076 = vset.pattern.permute.xlu0 1
      %1077 = vperm.xlu0 %1076, %v926
      %v1078 = vpop.permute.xlu0 %1077
      %1081 = vset.pattern.permute.xlu0 1
      %1082 = vperm.xlu0 %1081, %v927
      %v1083 = vpop.permute.xlu0 %1082
      %1086 = vset.pattern.permute.xlu0 1
      %1087 = vperm.xlu0 %1086, %v928
      %v1088 = vpop.permute.xlu0 %1087
      %1091 = vset.pattern.permute.xlu0 1
      %1092 = vperm.xlu0 %1091, %v929
      %v1093 = vpop.permute.xlu0 %1092
      %1096 = vset.pattern.permute.xlu0 1
      %1097 = vperm.xlu0 %1096, %v930
      %v1098 = vpop.permute.xlu0 %1097
      %v1100 = vmul.f32 %v996, %v1038
      %v1101 = vmul.f32 %v997, %v1038
      %v1102 = vmul.f32 %v998, %v1038
      %v1103 = vmul.f32 %v999, %v1043
      %v1104 = vmul.f32 %v1000, %v1043
      %v1105 = vmul.f32 %v1001, %v1043
      %v1106 = vmul.f32 %v1002, %v1048
      %v1107 = vmul.f32 %v1003, %v1048
      %v1108 = vmul.f32 %v1004, %v1048
      %v1109 = vmul.f32 %v1005, %v1053
      %v1110 = vmul.f32 %v1006, %v1053
      %v1111 = vmul.f32 %v1007, %v1053
      %v1112 = vmul.f32 %v1008, %v1058
      %v1113 = vmul.f32 %v1009, %v1058
      %v1114 = vmul.f32 %v1010, %v1058
      %v1115 = vmul.f32 %v1011, %v1063
      %v1116 = vmul.f32 %v1012, %v1063
      %v1117 = vmul.f32 %v1013, %v1063
      %v1118 = vmul.f32 %v1014, %v1068
      %v1119 = vmul.f32 %v1015, %v1068
      %v1120 = vmul.f32 %v1016, %v1068
      %v1121 = vmul.f32 %v1017, %v1073
      %v1122 = vmul.f32 %v1018, %v1073
      %v1123 = vmul.f32 %v1019, %v1073
      %v1124 = vmul.f32 %v1020, %v1078
      %v1125 = vmul.f32 %v1021, %v1078
      %v1126 = vmul.f32 %v1022, %v1078
      %v1127 = vmul.f32 %v1023, %v1083
      %v1128 = vmul.f32 %v1024, %v1083
      %v1129 = vmul.f32 %v1025, %v1083
      %v1130 = vmul.f32 %v1026, %v1088
      %v1131 = vmul.f32 %v1027, %v1088
      %v1132 = vmul.f32 %v1028, %v1088
      %v1133 = vmul.f32 %v1029, %v1093
      %v1134 = vmul.f32 %v1030, %v1093
      %v1135 = vmul.f32 %v1031, %v1093
      %v1136 = vmul.f32 %v1032, %v1098
      %v1137 = vmul.f32 %v1033, %v1098
      %v1138 = vmul.f32 %v1034, %v1098
      %v1139 = vtanh.pop %v1100
      %v1140 = vtanh.pop %v1101
      %v1141 = vtanh.pop %v1102
      %v1142 = vtanh.pop %v1103
      %v1143 = vtanh.pop %v1104
      %v1144 = vtanh.pop %v1105
      %v1145 = vtanh.pop %v1106
      %v1146 = vtanh.pop %v1107
      %v1147 = vtanh.pop %v1108
      %v1148 = vtanh.pop %v1109
      %v1149 = vtanh.pop %v1110
      %v1150 = vtanh.pop %v1111
      %v1151 = vtanh.pop %v1112
      %v1152 = vtanh.pop %v1113
      %v1153 = vtanh.pop %v1114
      %v1154 = vtanh.pop %v1115
      %v1155 = vtanh.pop %v1116
      %v1156 = vtanh.pop %v1117
      %v1157 = vtanh.pop %v1118
      %v1158 = vtanh.pop %v1119
      %v1159 = vtanh.pop %v1120
      %v1160 = vtanh.pop %v1121
      %v1161 = vtanh.pop %v1122
      %v1162 = vtanh.pop %v1123
      %v1163 = vtanh.pop %v1124
      %v1164 = vtanh.pop %v1125
      %v1165 = vtanh.pop %v1126
      %v1166 = vtanh.pop %v1127
      %v1167 = vtanh.pop %v1128
      %v1168 = vtanh.pop %v1129
      %v1169 = vtanh.pop %v1130
      %v1170 = vtanh.pop %v1131
      %v1171 = vtanh.pop %v1132
      %v1172 = vtanh.pop %v1133
      %v1173 = vtanh.pop %v1134
      %v1174 = vtanh.pop %v1135
      %v1175 = vtanh.pop %v1136
      %v1176 = vtanh.pop %v1137
      %v1177 = vtanh.pop %v1138
      %1178 = vst [vmem:[%s208] sm:$0xff] %v1139
      %1179 = vst [vmem:[%s208 + $0x8] sm:$0xff] %v1140
      %vm1180 = vcmask 556032
      %1181 = vst.msk [vmem:[%s208 + $0x10] sm:$0xff] %vm1180, %v1141
      %1182 = vst [vmem:[%s208 + $0x18] sm:$0xff] %v1142
      %1183 = vst [vmem:[%s208 + $0x20] sm:$0xff] %v1143
      %1184 = vst.msk [vmem:[%s208 + $0x28] sm:$0xff] %vm1180, %v1144
      %1185 = vst [vmem:[%s208 + $0x30] sm:$0xff] %v1145
      %1186 = vst [vmem:[%s208 + $0x38] sm:$0xff] %v1146
      %1187 = vst.msk [vmem:[%s208 + $0x40] sm:$0xff] %vm1180, %v1147
      %1188 = vst [vmem:[%s208 + $0x48] sm:$0xff] %v1148
      %1189 = vst [vmem:[%s208 + $0x50] sm:$0xff] %v1149
      %1190 = vst.msk [vmem:[%s208 + $0x58] sm:$0xff] %vm1180, %v1150
      %1191 = vst [vmem:[%s208 + $0x60] sm:$0xff] %v1151
      %1192 = vst [vmem:[%s208 + $0x68] sm:$0xff] %v1152
      %1193 = vst.msk [vmem:[%s208 + $0x70] sm:$0xff] %vm1180, %v1153
      %1194 = vst [vmem:[%s208 + $0x78] sm:$0xff] %v1154
      %1195 = vst [vmem:[%s208 + $0x80] sm:$0xff] %v1155
      %1196 = vst.msk [vmem:[%s208 + $0x88] sm:$0xff] %vm1180, %v1156
      %1197 = vst [vmem:[%s208 + $0x90] sm:$0xff] %v1157
      %1198 = vst [vmem:[%s208 + $0x98] sm:$0xff] %v1158
      %1199 = vst.msk [vmem:[%s208 + $0xa0] sm:$0xff] %vm1180, %v1159
      %1200 = vst [vmem:[%s208 + $0xa8] sm:$0xff] %v1160
      %1201 = vst [vmem:[%s208 + $0xb0] sm:$0xff] %v1161
      %1202 = vst.msk [vmem:[%s208 + $0xb8] sm:$0xff] %vm1180, %v1162
      %1203 = vst [vmem:[%s208 + $0xc0] sm:$0xff] %v1163
      %1204 = vst [vmem:[%s208 + $0xc8] sm:$0xff] %v1164
      %1205 = vst.msk [vmem:[%s208 + $0xd0] sm:$0xff] %vm1180, %v1165
      %1206 = vst [vmem:[%s208 + $0xd8] sm:$0xff] %v1166
      %1207 = vst [vmem:[%s208 + $0xe0] sm:$0xff] %v1167
      %1208 = vst.msk [vmem:[%s208 + $0xe8] sm:$0xff] %vm1180, %v1168
      %1209 = vst [vmem:[%s208 + $0xf0] sm:$0xff] %v1169
      %1210 = vst [vmem:[%s208 + $0xf8] sm:$0xff] %v1170
      %1211 = vst.msk [vmem:[%s208 + $0x100] sm:$0xff] %vm1180, %v1171
      %1212 = vst [vmem:[%s208 + $0x108] sm:$0xff] %v1172
      %1213 = vst [vmem:[%s208 + $0x110] sm:$0xff] %v1173
      %1214 = vst.msk [vmem:[%s208 + $0x118] sm:$0xff] %vm1180, %v1174
      %1215 = vst [vmem:[%s208 + $0x120] sm:$0xf] %v1175
      %1216 = vst [vmem:[%s208 + $0x128] sm:$0xf] %v1176
      %vm1217 = vcmask 551936
      %1218 = vst.msk [vmem:[%s208 + $0x130] sm:$0xf] %vm1217, %v1177
      %s1219 = smul.u32 3, %s19
      %p1220 = scmp.lt.s32.totalorder %s18, 1
      %s1221 = scalar_select %p1220, %s18, 1
      %p1222 = scmp.lt.s32.totalorder %s1219, 2
      %s1223 = scalar_select %p1222, %s1219, 2
      %s1224 = smul.addr %s1221, 39
      %s1225 = sadd.s32 %s1223, %s1224
      %s1226 = smul.addr %s1225, 8
      %s1227 = scalar_lea.vmem %s3, %s1226
      // Predicated region
      $region33: #{model_forward.3} parent=31 // pred_check
        %p1228 = pneg %p116
      $region34: #{model_forward.3} parent=31 // pred_check_branch
        %1230 = sbr.rel (%p1228) target = $region36
      $region35: #{model_forward.3} parent=31 // pred_region
        %s1231 = smul.u32 3, %s19
      $region36: #{model_forward.3} parent=31 // pred_fallthru
        _
    $region32: #{model_forward.3} parent=5 // pred_fallthru
      _
    %p1232 = scmp.le.s32.totalorder 2, %s9
    // Predicated region
    $region37: #{model_forward.3} parent=5 // pred_check
      %p1233 = pneg %p1232
    $region38: #{model_forward.3} parent=5 // pred_check_branch
      %1235 = sbr.rel (%p1233) target = $region40
    $region39: #{model_forward.3} parent=5 // pred_region
      %s1236 = ssub.s32 %s9, 2
      // Predicated region
      $region41: #{model_forward.3} parent=39 // pred_check
        %p1237 = pneg %p122
      $region42: #{model_forward.3} parent=39 // pred_check_branch
        %1239 = sbr.rel (%p1237) target = $region44
      $region43: #{model_forward.3} parent=39 // pred_region
        %s1240 = smul.u32 3, %s21
        %p1241 = scmp.lt.s32.totalorder %s20, 1
        %s1242 = scalar_select %p1241, %s20, 1
        %p1243 = scmp.lt.s32.totalorder %s1240, 2
        %s1244 = scalar_select %p1243, %s1240, 2
        %s1245 = smul.addr %s1242, 39
        %s1246 = sadd.s32 %s1244, %s1245
        %s1247 = smul.addr %s1246, 8
        %s1248 = scalar_lea.vmem %s3, %s1247
      $region44: #{model_forward.3} parent=39 // pred_fallthru
        _
    $region40: #{model_forward.3} parent=5 // pred_fallthru
      _
  $region6: #{model_forward.3} parent=0 // loop_footer
    %s13 = sadd.s32 1, %s9
  $region7: #{model_forward.3} parent=0 // loop_footer_branch
    %8 = sbr.rel target = $region3
  $region8: #{model_forward.3} parent=0 // loop_exit
    _

// kernel: model_forward.2
$region0: #{model_forward.2}
  #allocation0 [shape = 'u32[]', space=smem, size = 0x4, offset = 0x4, fixed_abs, tag = 'smem constant byte address 0x4 - core index']
  #allocation1 [shape = 'u32[144,128]{1,0:T(1,128)}', space=vmem, size = 0x12000, scoped, tag = 'internal scratch']
  %s0 = inlined_call_operand.vmem [shape: f32[2,8,324], index: 0, kind: input, shape index: {}]
  %s1 = inlined_call_operand.vmem [shape: f32[100,8], index: 1, kind: input, shape index: {}]
  %s2 = inlined_call_operand.vmem [shape: f32[2,100,2], index: 2, kind: output, shape index: {}]
  %s3 = sld [smem:[#allocation0]]
  $region45: #{model_forward.2} parent=0
    _
  %s5 = ssub.s32 1, %s3
  %s6 = scalar_select 0, %s5, %s3
  loop: start=0, step=1, limit=4
  $region2: #{model_forward.2} parent=0 // loop_pre_header
    _
  $region3: #{model_forward.2} parent=0 // loop_header
    %s8 = sphi 0, %s12
    %p9 = scmp.ge.s32.totalorder %s8, 4
    %s15 = sphi 0, %s27
    %s16 = sphi 0, %s23
    %s17 = sphi 0, %s15
    %s18 = sphi 0, %s16
    %s19 = sphi 0, %s17
    %s20 = sphi 0, %s18
    %s32 = sphi 0, %s34
    %s35 = sphi 0, %s32
    %s36 = sphi 0, %s35
    %s52 = sphi 0, %s36
    %s56 = sphi 0, %s56
    %s58 = sphi 0, %s56
    %s59 = sphi 0, %s58
    %s73 = sphi 0, %s59
    %s79 = sphi 0, %s81
    %s82 = sphi 0, %s79
    %s83 = sphi 0, %s82
    %s99 = sphi 0, %s83
  $region4: #{model_forward.2} parent=0 // loop_header_branch
    %11 = sbr.rel (%p9) target = $region8
  $region5: #{model_forward.2} parent=0 // loop_body
    %s13 = ssub.s32 %s8, 1
    %s14 = ssub.s32 %s8, 2
    %s21 = sadd.s32 1, %s16
    %p22 = scmp.ge.s32.totalorder %s21, 1
    %s23 = scalar_select %p22, 0, %s21
    %s24 = sadd.s32 1, %s15
    %s25 = scalar_select %p22, %s24, %s15
    %p26 = scmp.ge.s32.totalorder %s25, 2
    %s27 = scalar_select %p26, 0, %s25
    %s28 = ssub.s32 %s15, %s27
    %s29 = ssub.s32 %s16, %s23
    %s30 = sor.u32 %s28, %s29
    %p31 = scmp.eq.s32.totalorder %s30, 0
    %s33 = sadd.s32 %s32, 1
    %s34 = scalar_select %p31, %s32, %s33
    %p37 = pneg %p31
    %p38 = scmp.eq.s32.totalorder %s8, 1
    %p39 = por %p37, %p38
    %p40 = scmp.ne.s32.totalorder %s32, %s35
    %p41 = scmp.eq.s32.totalorder %s8, 0
    %p42 = por %p40, %p41
    %p43 = scmp.ne.s32.totalorder %s32, %s35
    %p44 = scmp.eq.s32.totalorder %s13, 1
    %p45 = por %p43, %p44
    %p46 = scmp.ne.s32.totalorder %s35, %s36
    %p47 = scmp.eq.s32.totalorder %s13, 0
    %p48 = por %p46, %p47
    %p49 = scmp.ne.s32.totalorder %s35, %s36
    %p50 = scmp.eq.s32.totalorder %s14, 1
    %p51 = por %p49, %p50
    %p53 = scmp.ne.s32.totalorder %s36, %s52
    %p54 = scmp.eq.s32.totalorder %s14, 0
    %p55 = por %p53, %p54
    %s57 = sadd.s32 %s56, 1
    %p60 = scmp.eq.s32.totalorder %s8, 1
    %p61 = scmp.ne.s32.totalorder %s56, %s58
    %p62 = scmp.eq.s32.totalorder %s8, 0
    %p63 = por %p61, %p62
    %p64 = scmp.ne.s32.totalorder %s56, %s58
    %p65 = scmp.eq.s32.totalorder %s13, 1
    %p66 = por %p64, %p65
    %p67 = scmp.ne.s32.totalorder %s58, %s59
    %p68 = scmp.eq.s32.totalorder %s13, 0
    %p69 = por %p67, %p68
    %p70 = scmp.ne.s32.totalorder %s58, %s59
    %p71 = scmp.eq.s32.totalorder %s14, 1
    %p72 = por %p70, %p71
    %p74 = scmp.ne.s32.totalorder %s59, %s73
    %p75 = scmp.eq.s32.totalorder %s14, 0
    %p76 = por %p74, %p75
    %s77 = ssub.s32 %s15, %s27
    %p78 = scmp.eq.s32.totalorder %s77, 0
    %s80 = sadd.s32 %s79, 1
    %s81 = scalar_select %p78, %s79, %s80
    %p84 = pneg %p78
    %p85 = scmp.eq.s32.totalorder %s8, 1
    %p86 = por %p84, %p85
    %p87 = scmp.ne.s32.totalorder %s79, %s82
    %p88 = scmp.eq.s32.totalorder %s8, 0
    %p89 = por %p87, %p88
    %p90 = scmp.ne.s32.totalorder %s79, %s82
    %p91 = scmp.eq.s32.totalorder %s13, 1
    %p92 = por %p90, %p91
    %p93 = scmp.ne.s32.totalorder %s82, %s83
    %p94 = scmp.eq.s32.totalorder %s13, 0
    %p95 = por %p93, %p94
    %p96 = scmp.ne.s32.totalorder %s82, %s83
    %p97 = scmp.eq.s32.totalorder %s14, 1
    %p98 = por %p96, %p97
    %p100 = scmp.ne.s32.totalorder %s83, %s99
    %p101 = scmp.eq.s32.totalorder %s14, 0
    %p102 = por %p100, %p101
    %p103 = scmp.le.s32.totalorder 1, %s8
    %p104 = scmp.lt.s32.totalorder %s8, 3
    %p105 = pnand %p103, %p104
    %p106 = pneg %p105
    // Predicated region
    $region9: #{model_forward.2} parent=5 // pred_check
      _
    $region10: #{model_forward.2} parent=5 // pred_check_branch
      %108 = sbr.rel (%p105) target = $region12
    $region11: #{model_forward.2} parent=5 // pred_region
      %s109 = ssub.s32 %s8, 1
      // Predicated region
      $region13: #{model_forward.2} parent=11 // pred_check
        %p110 = pneg %p69
      $region14: #{model_forward.2} parent=11 // pred_check_branch
        %112 = sbr.rel (%p110) target = $region16
      $region15: #{model_forward.2} parent=11 // pred_region
        _
      $region16: #{model_forward.2} parent=11 // pred_fallthru
        _
    $region12: #{model_forward.2} parent=5 // pred_fallthru
      _
    %p113 = scmp.lt.s32.totalorder %s8, 2
    // Predicated region
    $region17: #{model_forward.2} parent=5 // pred_check
      %p114 = pneg %p113
    $region18: #{model_forward.2} parent=5 // pred_check_branch
      %116 = sbr.rel (%p114) target = $region20
    $region19: #{model_forward.2} parent=5 // pred_region
      // Predicated region
      $region21: #{model_forward.2} parent=19 // pred_check
        %p117 = pneg %p42
      $region22: #{model_forward.2} parent=19 // pred_check_branch
        %119 = sbr.rel (%p117) target = $region24
      $region23: #{model_forward.2} parent=19 // pred_region
        %s120 = smul.u32 3, %s16
        %p121 = scmp.lt.s32.totalorder %s15, 1
        %s122 = scalar_select %p121, %s15, 1
        %p123 = scmp.lt.s32.totalorder %s120, 2
        %s124 = scalar_select %p123, %s120, 2
        %s125 = smul.addr %s122, 3
        %s126 = sadd.s32 %s124, %s125
        %s127 = smul.addr %s126, 8
        %s128 = scalar_lea.vmem %s0, %s127
        %s129 = smul.u32 3, %s16
      $region24: #{model_forward.2} parent=19 // pred_fallthru
        _
    $region20: #{model_forward.2} parent=5 // pred_fallthru
      _
    %p130 = scmp.le.s32.totalorder 1, %s8
    %p131 = scmp.lt.s32.totalorder %s8, 3
    %p132 = pnand %p130, %p131
    %p133 = pneg %p132
    // Predicated region
    $region25: #{model_forward.2} parent=5 // pred_check
      _
    $region26: #{model_forward.2} parent=5 // pred_check_branch
      %135 = sbr.rel (%p132) target = $region28
    $region27: #{model_forward.2} parent=5 // pred_region
      %s136 = ssub.s32 %s8, 1
      %s137 = smul.u32 3, %s18
      %p138 = scmp.lt.s32.totalorder %s17, 1
      %s139 = scalar_select %p138, %s17, 1
      %p140 = scmp.lt.s32.totalorder %s137, 2
      %s141 = scalar_select %p140, %s137, 2
      %s142 = smul.addr %s139, 3
      %s143 = sadd.s32 %s141, %s142
      %s144 = smul.addr %s143, 8
      %s145 = scalar_lea.vmem %s0, %s144
      %p146 = pneg %p48
      %p147 = pneg %p45
      %p148 = pneg %p69
      %p149 = pneg %p66
      %p150 = pneg %p95
      %p151 = pneg %p92
      %p152 = scmp.lt.s32.totalorder %s17, 1
      %s153 = scalar_select %p152, %s17, 1
      %s154 = smul.addr %s153, 13
      %s155 = smul.addr %s154, 8
      %s156 = scalar_lea.vmem %s2, %s155
      %s157 = smul.u32 3, %s18
      %p158 = scmp.lt.s32.totalorder %s17, 1
      %s159 = scalar_select %p158, %s17, 1
      %p160 = scmp.lt.s32.totalorder %s157, 2
      %s161 = scalar_select %p160, %s157, 2
      %s162 = smul.addr %s159, 3
      %s163 = sadd.s32 %s161, %s162
      %s164 = smul.addr %s163, 8
      %s165 = scalar_lea.vmem %s0, %s164
      %s166 = smul.u32 3, %s18
      %p167 = scmp.lt.s32.totalorder %s17, 1
      %s168 = scalar_select %p167, %s17, 1
      %s169 = smul.addr %s168, 13
      %s170 = smul.addr %s169, 8
      %s171 = scalar_lea.vmem %s2, %s170
      %p172 = scmp.eq.s32.totalorder %s18, 0
      // Predicated region
      $region29: #{model_forward.2} parent=27 // pred_check
        %p173 = pneg %p172
      $region30: #{model_forward.2} parent=27 // pred_check_branch
        %175 = sbr.rel (%p173) target = $region32
      $region31: #{model_forward.2} parent=27 // pred_region
        %vm176 = vcmask 15360
        %177 = vst.msk [vmem:[%s171] sm:$0xff] %vm176, 0.0
        %178 = vst.msk [vmem:[%s171 + $0x8] sm:$0xff] %vm176, 0.0
        %179 = vst.msk [vmem:[%s171 + $0x10] sm:$0xff] %vm176, 0.0
        %180 = vst.msk [vmem:[%s171 + $0x18] sm:$0xff] %vm176, 0.0
        %181 = vst.msk [vmem:[%s171 + $0x20] sm:$0xff] %vm176, 0.0
        %182 = vst.msk [vmem:[%s171 + $0x28] sm:$0xff] %vm176, 0.0
        %183 = vst.msk [vmem:[%s171 + $0x30] sm:$0xff] %vm176, 0.0
        %184 = vst.msk [vmem:[%s171 + $0x38] sm:$0xff] %vm176, 0.0
        %185 = vst.msk [vmem:[%s171 + $0x40] sm:$0xff] %vm176, 0.0
        %186 = vst.msk [vmem:[%s171 + $0x48] sm:$0xff] %vm176, 0.0
        %187 = vst.msk [vmem:[%s171 + $0x50] sm:$0xff] %vm176, 0.0
        %188 = vst.msk [vmem:[%s171 + $0x58] sm:$0xff] %vm176, 0.0
        %vm189 = vcmask 11264
        %190 = vst.msk [vmem:[%s171 + $0x60] sm:$0xf] %vm189, 0.0
      $region32: #{model_forward.2} parent=27 // pred_fallthru
        _
      %v191 = vld [vmem:[%s1] sm:$0xff]
      %v192 = vld [vmem:[%s1 + $0x8] sm:$0xff]
      %v193 = vld [vmem:[%s1 + $0x10] sm:$0xff]
      %v194 = vld [vmem:[%s1 + $0x18] sm:$0xff]
      %v195 = vld [vmem:[%s1 + $0x20] sm:$0xff]
      %v196 = vld [vmem:[%s1 + $0x28] sm:$0xff]
      %v197 = vld [vmem:[%s1 + $0x30] sm:$0xff]
      %v198 = vld [vmem:[%s1 + $0x38] sm:$0xff]
      %v199 = vld [vmem:[%s1 + $0x40] sm:$0xff]
      %v200 = vld [vmem:[%s1 + $0x48] sm:$0xff]
      %v201 = vld [vmem:[%s1 + $0x50] sm:$0xff]
      %v202 = vld [vmem:[%s1 + $0x58] sm:$0xff]
      %v203 = vld [vmem:[%s1 + $0x60] sm:$0xf]
      %v204 = vld [vmem:[%s165] sm:$0xff]
      %v205 = vld [vmem:[%s165 + $0x8] sm:$0xff]
      %v206 = vld [vmem:[%s165 + $0x10] sm:$0xff]
      %vm207 = vcmask 64512
      %v209 = vsel %vm207, %v191, 0
      %v212 = vsel %vm207, %v192, 0
      %v215 = vsel %vm207, %v193, 0
      %v218 = vsel %vm207, %v194, 0
      %v221 = vsel %vm207, %v195, 0
      %v224 = vsel %vm207, %v196, 0
      %v227 = vsel %vm207, %v197, 0
      %v230 = vsel %vm207, %v198, 0
      %v233 = vsel %vm207, %v199, 0
      %v236 = vsel %vm207, %v200, 0
      %v239 = vsel %vm207, %v201, 0
      %v242 = vsel %vm207, %v202, 0
      %v245 = vsel %vm207, %v203, 0
      %247 = vmatprep.subr.mxu0 %v205
      %248 = vmatpush1.msra.mxu0 %v204
      %249 = vmatprep.subr.mxu0 0.0
      %250 = vmatpush1.msra.mxu0 0.0
      %251 = vmatprep.subr.mxu0 0.0
      %252 = vmatpush1.msra.mxu0 0.0
      %253 = vmatprep.subr.mxu0 0.0
      %254 = vmatpush1.msra.mxu0 0.0
      %255 = vmatprep.subr.mxu0 0.0
      %256 = vmatpush1.msra.mxu0 0.0
      %257 = vmatprep.subr.mxu0 0.0
      %258 = vmatpush1.msra.mxu0 0.0
      %259 = vmatprep.subr.mxu0 0.0
      %260 = vmatpush1.msra.mxu0 0.0
      %261 = vmatprep.subr.mxu0 0.0
      %262 = vmatpush1.msra.mxu0 0.0
      %263 = vmatprep.subr.mxu0 0.0
      %264 = vmatpush1.msra.mxu0 0.0
      %265 = vmatprep.subr.mxu0 0.0
      %266 = vmatpush1.msra.mxu0 0.0
      %267 = vmatprep.subr.mxu0 0.0
      %268 = vmatpush1.msra.mxu0 0.0
      %269 = vmatprep.subr.mxu0 0.0
      %270 = vmatpush1.msra.mxu0 0.0
      %271 = vmatprep.subr.mxu0 0.0
      %272 = vmatpush1.msra.mxu0 0.0
      %273 = vmatprep.subr.mxu0 0.0
      %274 = vmatpush1.msra.mxu0 0.0
      %275 = vmatprep.subr.mxu0 0.0
      %276 = vmatpush1.msra.mxu0 0.0
      %277 = vmatprep.subr.mxu0 0.0
      %278 = vmatpush1.msra.mxu0 0.0
      %279 = vmatprep.subr.mxu0 0.0
      %280 = vmatpush1.msra.mxu0 0.0
      %281 = vmatprep.subr.mxu0 0.0
      %282 = vmatpush1.msra.mxu0 0.0
      %283 = vmatprep.subr.mxu0 0.0
      %284 = vmatpush1.msra.mxu0 0.0
      %285 = vmatprep.subr.mxu0 0.0
      %286 = vmatpush1.msra.mxu0 0.0
      %287 = vmatprep.subr.mxu0 0.0
      %288 = vmatpush1.msra.mxu0 0.0
      %289 = vmatprep.subr.mxu0 0.0
      %290 = vmatpush1.msra.mxu0 0.0
      %291 = vmatprep.subr.mxu0 0.0
      %292 = vmatpush1.msra.mxu0 0.0
      %293 = vmatprep.subr.mxu0 0.0
      %294 = vmatpush1.msra.mxu0 0.0
      %295 = vmatprep.subr.mxu0 0.0
      %296 = vmatpush1.msra.mxu0 0.0
      %297 = vmatprep.subr.mxu0 0.0
      %298 = vmatpush1.msra.mxu0 0.0
      %299 = vmatprep.subr.mxu0 0.0
      %300 = vmatpush1.msra.mxu0 0.0
      %301 = vmatprep.subr.mxu0 0.0
      %302 = vmatpush1.msra.mxu0 0.0
      %303 = vmatprep.subr.mxu0 0.0
      %304 = vmatpush1.msra.mxu0 0.0
      %305 = vmatprep.subr.mxu0 0.0
      %306 = vmatpush1.msra.mxu0 0.0
      %307 = vmatprep.subr.mxu0 0.0
      %308 = vmatpush1.msra.mxu0 0.0
      %309 = vmatprep.subr.mxu0 0.0
      %310 = vmatpush1.msra.mxu0 0.0
      %311 = vmatprep.mubr.f32.mxu0 0.0
      %312 = vmatmul.mubr.f32.gmra.mrb[0].mxu0 %v209
      %v313 = vpop.f32.mrb[0].mxu0
      %v314 = vadd.f32 0.0, %v313
      %v315 = vpop.f32.mrb[0].mxu0
      %v316 = vadd.f32 0.0, %v315
      %317 = vmatprep.mubr.f32.mxu0 0.0
      %318 = vmatmul.mubr.f32.gmra.mrb[0].mxu0 %v212
      %v319 = vpop.f32.mrb[0].mxu0
      %v320 = vadd.f32 0.0, %v319
      %v321 = vpop.f32.mrb[0].mxu0
      %v322 = vadd.f32 0.0, %v321
      %323 = vmatprep.mubr.f32.mxu0 0.0
      %324 = vmatmul.mubr.f32.gmra.mrb[0].mxu0 %v215
      %v325 = vpop.f32.mrb[0].mxu0
      %v326 = vadd.f32 0.0, %v325
      %v327 = vpop.f32.mrb[0].mxu0
      %v328 = vadd.f32 0.0, %v327
      %329 = vmatprep.mubr.f32.mxu0 0.0
      %330 = vmatmul.mubr.f32.gmra.mrb[0].mxu0 %v218
      %v331 = vpop.f32.mrb[0].mxu0
      %v332 = vadd.f32 0.0, %v331
      %v333 = vpop.f32.mrb[0].mxu0
      %v334 = vadd.f32 0.0, %v333
      %335 = vmatprep.mubr.f32.mxu0 0.0
      %336 = vmatmul.mubr.f32.gmra.mrb[0].mxu0 %v221
      %v337 = vpop.f32.mrb[0].mxu0
      %v338 = vadd.f32 0.0, %v337
      %v339 = vpop.f32.mrb[0].mxu0
      %v340 = vadd.f32 0.0, %v339
      %341 = vmatprep.mubr.f32.mxu0 0.0
      %342 = vmatmul.mubr.f32.gmra.mrb[0].mxu0 %v224
      %v343 = vpop.f32.mrb[0].mxu0
      %v344 = vadd.f32 0.0, %v343
      %v345 = vpop.f32.mrb[0].mxu0
      %v346 = vadd.f32 0.0, %v345
      %347 = vmatprep.mubr.f32.mxu0 0.0
      %348 = vmatmul.mubr.f32.gmra.mrb[0].mxu0 %v227
      %v349 = vpop.f32.mrb[0].mxu0
      %v350 = vadd.f32 0.0, %v349
      %v351 = vpop.f32.mrb[0].mxu0
      %v352 = vadd.f32 0.0, %v351
      %353 = vmatprep.mubr.f32.mxu0 0.0
      %354 = vmatmul.mubr.f32.gmra.mrb[0].mxu0 %v230
      %v355 = vpop.f32.mrb[0].mxu0
      %v356 = vadd.f32 0.0, %v355
      %v357 = vpop.f32.mrb[0].mxu0
      %v358 = vadd.f32 0.0, %v357
      %359 = vmatprep.mubr.f32.mxu0 0.0
      %360 = vmatmul.mubr.f32.gmra.mrb[0].mxu0 %v233
      %v361 = vpop.f32.mrb[0].mxu0
      %v362 = vadd.f32 0.0, %v361
      %v363 = vpop.f32.mrb[0].mxu0
      %v364 = vadd.f32 0.0, %v363
      %365 = vmatprep.mubr.f32.mxu0 0.0
      %366 = vmatmul.mubr.f32.gmra.mrb[0].mxu0 %v236
      %v367 = vpop.f32.mrb[0].mxu0
      %v368 = vadd.f32 0.0, %v367
      %v369 = vpop.f32.mrb[0].mxu0
      %v370 = vadd.f32 0.0, %v369
      %371 = vmatprep.mubr.f32.mxu0 0.0
      %372 = vmatmul.mubr.f32.gmra.mrb[0].mxu0 %v239
      %v373 = vpop.f32.mrb[0].mxu0
      %v374 = vadd.f32 0.0, %v373
      %v375 = vpop.f32.mrb[0].mxu0
      %v376 = vadd.f32 0.0, %v375
      %377 = vmatprep.mubr.f32.mxu0 0.0
      %378 = vmatmul.mubr.f32.gmra.mrb[0].mxu0 %v242
      %v379 = vpop.f32.mrb[0].mxu0
      %v380 = vadd.f32 0.0, %v379
      %v381 = vpop.f32.mrb[0].mxu0
      %v382 = vadd.f32 0.0, %v381
      %383 = vmatprep.mubr.f32.mxu0 0.0
      %384 = vmatmul.mubr.f32.gmra.mrb[0].mxu0 %v245
      %v385 = vpop.f32.mrb[0].mxu0
      %v386 = vadd.f32 0.0, %v385
      %v387 = vpop.f32.mrb[0].mxu0
      %v388 = vadd.f32 0.0, %v387
      %389 = vdwg.mxu0
      %390 = vmatprep.subr.mxu0 0.0
      %391 = vmatpush1.msra.mxu0 %v206
      %392 = vmatprep.subr.mxu0 0.0
      %393 = vmatpush1.msra.mxu0 0.0
      %394 = vmatprep.subr.mxu0 0.0
      %395 = vmatpush1.msra.mxu0 0.0
      %396 = vmatprep.subr.mxu0 0.0
      %397 = vmatpush1.msra.mxu0 0.0
      %398 = vmatprep.subr.mxu0 0.0
      %399 = vmatpush1.msra.mxu0 0.0
      %400 = vmatprep.subr.mxu0 0.0
      %401 = vmatpush1.msra.mxu0 0.0
      %402 = vmatprep.subr.mxu0 0.0
      %403 = vmatpush1.msra.mxu0 0.0
      %404 = vmatprep.subr.mxu0 0.0
      %405 = vmatpush1.msra.mxu0 0.0
      %406 = vmatprep.subr.mxu0 0.0
      %407 = vmatpush1.msra.mxu0 0.0
      %408 = vmatprep.subr.mxu0 0.0
      %409 = vmatpush1.msra.mxu0 0.0
      %410 = vmatprep.subr.mxu0 0.0
      %411 = vmatpush1.msra.mxu0 0.0
      %412 = vmatprep.subr.mxu0 0.0
      %413 = vmatpush1.msra.mxu0 0.0
      %414 = vmatprep.subr.mxu0 0.0
      %415 = vmatpush1.msra.mxu0 0.0
      %416 = vmatprep.subr.mxu0 0.0
      %417 = vmatpush1.msra.mxu0 0.0
      %418 = vmatprep.subr.mxu0 0.0
      %419 = vmatpush1.msra.mxu0 0.0
      %420 = vmatprep.subr.mxu0 0.0
      %421 = vmatpush1.msra.mxu0 0.0
      %422 = vmatprep.subr.mxu0 0.0
      %423 = vmatpush1.msra.mxu0 0.0
      %424 = vmatprep.subr.mxu0 0.0
      %425 = vmatpush1.msra.mxu0 0.0
      %426 = vmatprep.subr.mxu0 0.0
      %427 = vmatpush1.msra.mxu0 0.0
      %428 = vmatprep.subr.mxu0 0.0
      %429 = vmatpush1.msra.mxu0 0.0
      %430 = vmatprep.subr.mxu0 0.0
      %431 = vmatpush1.msra.mxu0 0.0
      %432 = vmatprep.subr.mxu0 0.0
      %433 = vmatpush1.msra.mxu0 0.0
      %434 = vmatprep.subr.mxu0 0.0
      %435 = vmatpush1.msra.mxu0 0.0
      %436 = vmatprep.subr.mxu0 0.0
      %437 = vmatpush1.msra.mxu0 0.0
      %438 = vmatprep.subr.mxu0 0.0
      %439 = vmatpush1.msra.mxu0 0.0
      %440 = vmatprep.subr.mxu0 0.0
      %441 = vmatpush1.msra.mxu0 0.0
      %442 = vmatprep.subr.mxu0 0.0
      %443 = vmatpush1.msra.mxu0 0.0
      %444 = vmatprep.subr.mxu0 0.0
      %445 = vmatpush1.msra.mxu0 0.0
      %446 = vmatprep.subr.mxu0 0.0
      %447 = vmatpush1.msra.mxu0 0.0
      %448 = vmatprep.subr.mxu0 0.0
      %449 = vmatpush1.msra.mxu0 0.0
      %450 = vmatprep.subr.mxu0 0.0
      %451 = vmatpush1.msra.mxu0 0.0
      %452 = vmatprep.subr.mxu0 0.0
      %453 = vmatpush1.msra.mxu0 0.0
      %454 = vmatprep.mubr.f32.mxu0 0.0
      %455 = vmatmul.mubr.f32.gmra.mrb[0].mxu0 %v209
      %v456 = vpop.f32.mrb[0].mxu0
      %v457 = vadd.f32 0.0, %v456
      %v458 = vpop.f32.mrb[0].mxu0
      %459 = vmatprep.mubr.f32.mxu0 0.0
      %460 = vmatmul.mubr.f32.gmra.mrb[0].mxu0 %v212
      %v461 = vpop.f32.mrb[0].mxu0
      %v462 = vadd.f32 0.0, %v461
      %v463 = vpop.f32.mrb[0].mxu0
      %464 = vmatprep.mubr.f32.mxu0 0.0
      %465 = vmatmul.mubr.f32.gmra.mrb[0].mxu0 %v215
      %v466 = vpop.f32.mrb[0].mxu0
      %v467 = vadd.f32 0.0, %v466
      %v468 = vpop.f32.mrb[0].mxu0
      %469 = vmatprep.mubr.f32.mxu0 0.0
      %470 = vmatmul.mubr.f32.gmra.mrb[0].mxu0 %v218
      %v471 = vpop.f32.mrb[0].mxu0
      %v472 = vadd.f32 0.0, %v471
      %v473 = vpop.f32.mrb[0].mxu0
      %474 = vmatprep.mubr.f32.mxu0 0.0
      %475 = vmatmul.mubr.f32.gmra.mrb[0].mxu0 %v221
      %v476 = vpop.f32.mrb[0].mxu0
      %v477 = vadd.f32 0.0, %v476
      %v478 = vpop.f32.mrb[0].mxu0
      %479 = vmatprep.mubr.f32.mxu0 0.0
      %480 = vmatmul.mubr.f32.gmra.mrb[0].mxu0 %v224
      %v481 = vpop.f32.mrb[0].mxu0
      %v482 = vadd.f32 0.0, %v481
      %v483 = vpop.f32.mrb[0].mxu0
      %484 = vmatprep.mubr.f32.mxu0 0.0
      %485 = vmatmul.mubr.f32.gmra.mrb[0].mxu0 %v227
      %v486 = vpop.f32.mrb[0].mxu0
      %v487 = vadd.f32 0.0, %v486
      %v488 = vpop.f32.mrb[0].mxu0
      %489 = vmatprep.mubr.f32.mxu0 0.0
      %490 = vmatmul.mubr.f32.gmra.mrb[0].mxu0 %v230
      %v491 = vpop.f32.mrb[0].mxu0
      %v492 = vadd.f32 0.0, %v491
      %v493 = vpop.f32.mrb[0].mxu0
      %494 = vmatprep.mubr.f32.mxu0 0.0
      %495 = vmatmul.mubr.f32.gmra.mrb[0].mxu0 %v233
      %v496 = vpop.f32.mrb[0].mxu0
      %v497 = vadd.f32 0.0, %v496
      %v498 = vpop.f32.mrb[0].mxu0
      %499 = vmatprep.mubr.f32.mxu0 0.0
      %500 = vmatmul.mubr.f32.gmra.mrb[0].mxu0 %v236
      %v501 = vpop.f32.mrb[0].mxu0
      %v502 = vadd.f32 0.0, %v501
      %v503 = vpop.f32.mrb[0].mxu0
      %504 = vmatprep.mubr.f32.mxu0 0.0
      %505 = vmatmul.mubr.f32.gmra.mrb[0].mxu0 %v239
      %v506 = vpop.f32.mrb[0].mxu0
      %v507 = vadd.f32 0.0, %v506
      %v508 = vpop.f32.mrb[0].mxu0
      %509 = vmatprep.mubr.f32.mxu0 0.0
      %510 = vmatmul.mubr.f32.gmra.mrb[0].mxu0 %v242
      %v511 = vpop.f32.mrb[0].mxu0
      %v512 = vadd.f32 0.0, %v511
      %v513 = vpop.f32.mrb[0].mxu0
      %514 = vmatprep.mubr.f32.mxu0 0.0
      %515 = vmatmul.mubr.f32.gmra.mrb[0].mxu0 %v245
      %v516 = vpop.f32.mrb[0].mxu0
      %v517 = vadd.f32 0.0, %v516
      %v518 = vpop.f32.mrb[0].mxu0
      %519 = vdwg.mxu0
      %v520 = vadd.f32 %v314, 3.0
      %v521 = vadd.f32 %v316, 3.0
      %v522 = vadd.f32 %v457, 3.0
      %v523 = vadd.f32 %v320, 3.0
      %v524 = vadd.f32 %v322, 3.0
      %v525 = vadd.f32 %v462, 3.0
      %v526 = vadd.f32 %v326, 3.0
      %v527 = vadd.f32 %v328, 3.0
      %v528 = vadd.f32 %v467, 3.0
      %v529 = vadd.f32 %v332, 3.0
      %v530 = vadd.f32 %v334, 3.0
      %v531 = vadd.f32 %v472, 3.0
      %v532 = vadd.f32 %v338, 3.0
      %v533 = vadd.f32 %v340, 3.0
      %v534 = vadd.f32 %v477, 3.0
      %v535 = vadd.f32 %v344, 3.0
      %v536 = vadd.f32 %v346, 3.0
      %v537 = vadd.f32 %v482, 3.0
      %v538 = vadd.f32 %v350, 3.0
      %v539 = vadd.f32 %v352, 3.0
      %v540 = vadd.f32 %v487, 3.0
      %v541 = vadd.f32 %v356, 3.0
      %v542 = vadd.f32 %v358, 3.0
      %v543 = vadd.f32 %v492, 3.0
      %v544 = vadd.f32 %v362, 3.0
      %v545 = vadd.f32 %v364, 3.0
      %v546 = vadd.f32 %v497, 3.0
      %v547 = vadd.f32 %v368, 3.0
      %v548 = vadd.f32 %v370, 3.0
      %v549 = vadd.f32 %v502, 3.0
      %v550 = vadd.f32 %v374, 3.0
      %v551 = vadd.f32 %v376, 3.0
      %v552 = vadd.f32 %v507, 3.0
      %v553 = vadd.f32 %v380, 3.0
      %v554 = vadd.f32 %v382, 3.0
      %v555 = vadd.f32 %v512, 3.0
      %v556 = vadd.f32 %v386, 3.0
      %v557 = vadd.f32 %v388, 3.0
      %v558 = vadd.f32 %v517, 3.0
      %v559 = vmax.f32 %v520, 0.0
      %v560 = vmax.f32 %v521, 0.0
      %v561 = vmax.f32 %v522, 0.0
      %v562 = vmax.f32 %v523, 0.0
      %v563 = vmax.f32 %v524, 0.0
      %v564 = vmax.f32 %v525, 0.0
      %v565 = vmax.f32 %v526, 0.0
      %v566 = vmax.f32 %v527, 0.0
      %v567 = vmax.f32 %v528, 0.0
      %v568 = vmax.f32 %v529, 0.0
      %v569 = vmax.f32 %v530, 0.0
      %v570 = vmax.f32 %v531, 0.0
      %v571 = vmax.f32 %v532, 0.0
      %v572 = vmax.f32 %v533, 0.0
      %v573 = vmax.f32 %v534, 0.0
      %v574 = vmax.f32 %v535, 0.0
      %v575 = vmax.f32 %v536, 0.0
      %v576 = vmax.f32 %v537, 0.0
      %v577 = vmax.f32 %v538, 0.0
      %v578 = vmax.f32 %v539, 0.0
      %v579 = vmax.f32 %v540, 0.0
      %v580 = vmax.f32 %v541, 0.0
      %v581 = vmax.f32 %v542, 0.0
      %v582 = vmax.f32 %v543, 0.0
      %v583 = vmax.f32 %v544, 0.0
      %v584 = vmax.f32 %v545, 0.0
      %v585 = vmax.f32 %v546, 0.0
      %v586 = vmax.f32 %v547, 0.0
      %v587 = vmax.f32 %v548, 0.0
      %v588 = vmax.f32 %v549, 0.0
      %v589 = vmax.f32 %v550, 0.0
      %v590 = vmax.f32 %v551, 0.0
      %v591 = vmax.f32 %v552, 0.0
      %v592 = vmax.f32 %v553, 0.0
      %v593 = vmax.f32 %v554, 0.0
      %v594 = vmax.f32 %v555, 0.0
      %v595 = vmax.f32 %v556, 0.0
      %v596 = vmax.f32 %v557, 0.0
      %v597 = vmax.f32 %v558, 0.0
      %v598 = vmin.f32 %v559, 6.0
      %v599 = vmin.f32 %v560, 6.0
      %v600 = vmin.f32 %v561, 6.0
      %v601 = vmin.f32 %v562, 6.0
      %v602 = vmin.f32 %v563, 6.0
      %v603 = vmin.f32 %v564, 6.0
      %v604 = vmin.f32 %v565, 6.0
      %v605 = vmin.f32 %v566, 6.0
      %v606 = vmin.f32 %v567, 6.0
      %v607 = vmin.f32 %v568, 6.0
      %v608 = vmin.f32 %v569, 6.0
      %v609 = vmin.f32 %v570, 6.0
      %v610 = vmin.f32 %v571, 6.0
      %v611 = vmin.f32 %v572, 6.0
      %v612 = vmin.f32 %v573, 6.0
      %v613 = vmin.f32 %v574, 6.0
      %v614 = vmin.f32 %v575, 6.0
      %v615 = vmin.f32 %v576, 6.0
      %v616 = vmin.f32 %v577, 6.0
      %v617 = vmin.f32 %v578, 6.0
      %v618 = vmin.f32 %v579, 6.0
      %v619 = vmin.f32 %v580, 6.0
      %v620 = vmin.f32 %v581, 6.0
      %v621 = vmin.f32 %v582, 6.0
      %v622 = vmin.f32 %v583, 6.0
      %v623 = vmin.f32 %v584, 6.0
      %v624 = vmin.f32 %v585, 6.0
      %v625 = vmin.f32 %v586, 6.0
      %v626 = vmin.f32 %v587, 6.0
      %v627 = vmin.f32 %v588, 6.0
      %v628 = vmin.f32 %v589, 6.0
      %v629 = vmin.f32 %v590, 6.0
      %v630 = vmin.f32 %v591, 6.0
      %v631 = vmin.f32 %v592, 6.0
      %v632 = vmin.f32 %v593, 6.0
      %v633 = vmin.f32 %v594, 6.0
      %v634 = vmin.f32 %v595, 6.0
      %v635 = vmin.f32 %v596, 6.0
      %v636 = vmin.f32 %v597, 6.0
      %v637 = vmul.f32 %v314, %v598
      %v638 = vmul.f32 %v316, %v599
      %v639 = vmul.f32 %v457, %v600
      %v640 = vmul.f32 %v320, %v601
      %v641 = vmul.f32 %v322, %v602
      %v642 = vmul.f32 %v462, %v603
      %v643 = vmul.f32 %v326, %v604
      %v644 = vmul.f32 %v328, %v605
      %v645 = vmul.f32 %v467, %v606
      %v646 = vmul.f32 %v332, %v607
      %v647 = vmul.f32 %v334, %v608
      %v648 = vmul.f32 %v472, %v609
      %v649 = vmul.f32 %v338, %v610
      %v650 = vmul.f32 %v340, %v611
      %v651 = vmul.f32 %v477, %v612
      %v652 = vmul.f32 %v344, %v613
      %v653 = vmul.f32 %v346, %v614
      %v654 = vmul.f32 %v482, %v615
      %v655 = vmul.f32 %v350, %v616
      %v656 = vmul.f32 %v352, %v617
      %v657 = vmul.f32 %v487, %v618
      %v658 = vmul.f32 %v356, %v619
      %v659 = vmul.f32 %v358, %v620
      %v660 = vmul.f32 %v492, %v621
      %v661 = vmul.f32 %v362, %v622
      %v662 = vmul.f32 %v364, %v623
      %v663 = vmul.f32 %v497, %v624
      %v664 = vmul.f32 %v368, %v625
      %v665 = vmul.f32 %v370, %v626
      %v666 = vmul.f32 %v502, %v627
      %v667 = vmul.f32 %v374, %v628
      %v668 = vmul.f32 %v376, %v629
      %v669 = vmul.f32 %v507, %v630
      %v670 = vmul.f32 %v380, %v631
      %v671 = vmul.f32 %v382, %v632
      %v672 = vmul.f32 %v512, %v633
      %v673 = vmul.f32 %v386, %v634
      %v674 = vmul.f32 %v388, %v635
      %v675 = vmul.f32 %v517, %v636
      %v676 = vmul.f32 %v637, 0.16666667
      %v677 = vmul.f32 %v638, 0.16666667
      %v678 = vmul.f32 %v639, 0.16666667
      %v679 = vmul.f32 %v640, 0.16666667
      %v680 = vmul.f32 %v641, 0.16666667
      %v681 = vmul.f32 %v642, 0.16666667
      %v682 = vmul.f32 %v643, 0.16666667
      %v683 = vmul.f32 %v644, 0.16666667
      %v684 = vmul.f32 %v645, 0.16666667
      %v685 = vmul.f32 %v646, 0.16666667
      %v686 = vmul.f32 %v647, 0.16666667
      %v687 = vmul.f32 %v648, 0.16666667
      %v688 = vmul.f32 %v649, 0.16666667
      %v689 = vmul.f32 %v650, 0.16666667
      %v690 = vmul.f32 %v651, 0.16666667
      %v691 = vmul.f32 %v652, 0.16666667
      %v692 = vmul.f32 %v653, 0.16666667
      %v693 = vmul.f32 %v654, 0.16666667
      %v694 = vmul.f32 %v655, 0.16666667
      %v695 = vmul.f32 %v656, 0.16666667
      %v696 = vmul.f32 %v657, 0.16666667
      %v697 = vmul.f32 %v658, 0.16666667
      %v698 = vmul.f32 %v659, 0.16666667
      %v699 = vmul.f32 %v660, 0.16666667
      %v700 = vmul.f32 %v661, 0.16666667
      %v701 = vmul.f32 %v662, 0.16666667
      %v702 = vmul.f32 %v663, 0.16666667
      %v703 = vmul.f32 %v664, 0.16666667
      %v704 = vmul.f32 %v665, 0.16666667
      %v705 = vmul.f32 %v666, 0.16666667
      %v706 = vmul.f32 %v667, 0.16666667
      %v707 = vmul.f32 %v668, 0.16666667
      %v708 = vmul.f32 %v669, 0.16666667
      %v709 = vmul.f32 %v670, 0.16666667
      %v710 = vmul.f32 %v671, 0.16666667
      %v711 = vmul.f32 %v672, 0.16666667
      %v712 = vmul.f32 %v673, 0.16666667
      %v713 = vmul.f32 %v674, 0.16666667
      %v714 = vmul.f32 %v675, 0.16666667
      %v715 = vld [vmem:[%s171] sm:$0xff]
      %v716 = vld [vmem:[%s171 + $0x8] sm:$0xff]
      %v717 = vld [vmem:[%s171 + $0x10] sm:$0xff]
      %v718 = vld [vmem:[%s171 + $0x18] sm:$0xff]
      %v719 = vld [vmem:[%s171 + $0x20] sm:$0xff]
      %v720 = vld [vmem:[%s171 + $0x28] sm:$0xff]
      %v721 = vld [vmem:[%s171 + $0x30] sm:$0xff]
      %v722 = vld [vmem:[%s171 + $0x38] sm:$0xff]
      %v723 = vld [vmem:[%s171 + $0x40] sm:$0xff]
      %v724 = vld [vmem:[%s171 + $0x48] sm:$0xff]
      %v725 = vld [vmem:[%s171 + $0x50] sm:$0xff]
      %v726 = vld [vmem:[%s171 + $0x58] sm:$0xff]
      %v727 = vld [vmem:[%s171 + $0x60] sm:$0xf]
      %v728 = vadd.f32 %v676, %v677
      %vm729 = vcmask 556032
      %v730 = vsel %vm729, %v678, 0.0
      %v731 = vadd.f32 %v728, %v730
      %732 = vadd.xlane.f32.xlu0 %v731
      %v733 = vpop.xlane.xlu0 %732
      %v734 = vadd.f32 %v679, %v680
      %v735 = vsel %vm729, %v681, 0.0
      %v736 = vadd.f32 %v734, %v735
      %737 = vadd.xlane.f32.xlu0 %v736
      %v738 = vpop.xlane.xlu0 %737
      %v739 = vadd.f32 %v682, %v683
      %v740 = vsel %vm729, %v684, 0.0
      %v741 = vadd.f32 %v739, %v740
      %742 = vadd.xlane.f32.xlu0 %v741
      %v743 = vpop.xlane.xlu0 %742
      %v744 = vadd.f32 %v685, %v686
      %v745 = vsel %vm729, %v687, 0.0
      %v746 = vadd.f32 %v744, %v745
      %747 = vadd.xlane.f32.xlu0 %v746
      %v748 = vpop.xlane.xlu0 %747
      %v749 = vadd.f32 %v688, %v689
      %v750 = vsel %vm729, %v690, 0.0
      %v751 = vadd.f32 %v749, %v750
      %752 = vadd.xlane.f32.xlu0 %v751
      %v753 = vpop.xlane.xlu0 %752
      %v754 = vadd.f32 %v691, %v692
      %v755 = vsel %vm729, %v693, 0.0
      %v756 = vadd.f32 %v754, %v755
      %757 = vadd.xlane.f32.xlu0 %v756
      %v758 = vpop.xlane.xlu0 %757
      %v759 = vadd.f32 %v694, %v695
      %v760 = vsel %vm729, %v696, 0.0
      %v761 = vadd.f32 %v759, %v760
      %762 = vadd.xlane.f32.xlu0 %v761
      %v763 = vpop.xlane.xlu0 %762
      %v764 = vadd.f32 %v697, %v698
      %v765 = vsel %vm729, %v699, 0.0
      %v766 = vadd.f32 %v764, %v765
      %767 = vadd.xlane.f32.xlu0 %v766
      %v768 = vpop.xlane.xlu0 %767
      %v769 = vadd.f32 %v700, %v701
      %v770 = vsel %vm729, %v702, 0.0
      %v771 = vadd.f32 %v769, %v770
      %772 = vadd.xlane.f32.xlu0 %v771
      %v773 = vpop.xlane.xlu0 %772
      %v774 = vadd.f32 %v703, %v704
      %v775 = vsel %vm729, %v705, 0.0
      %v776 = vadd.f32 %v774, %v775
      %777 = vadd.xlane.f32.xlu0 %v776
      %v778 = vpop.xlane.xlu0 %777
      %v779 = vadd.f32 %v706, %v707
      %v780 = vsel %vm729, %v708, 0.0
      %v781 = vadd.f32 %v779, %v780
      %782 = vadd.xlane.f32.xlu0 %v781
      %v783 = vpop.xlane.xlu0 %782
      %v784 = vadd.f32 %v709, %v710
      %v785 = vsel %vm729, %v711, 0.0
      %v786 = vadd.f32 %v784, %v785
      %787 = vadd.xlane.f32.xlu0 %v786
      %v788 = vpop.xlane.xlu0 %787
      %vm789 = vcmask 1043456
      %v790 = vsel %vm789, %v712, 0.0
      %v791 = vsel %vm789, %v713, 0.0
      %v792 = vadd.f32 %v790, %v791
      %vm793 = vcmask 551936
      %v794 = vsel %vm793, %v714, 0.0
      %v795 = vadd.f32 %v792, %v794
      %796 = vadd.xlane.f32.xlu0 %v795
      %v797 = vpop.xlane.xlu0 %796
      %v798 = vadd.f32 %v715, %v733
      %v799 = vadd.f32 %v716, %v738
      %v800 = vadd.f32 %v717, %v743
      %v801 = vadd.f32 %v718, %v748
      %v802 = vadd.f32 %v719, %v753
      %v803 = vadd.f32 %v720, %v758
      %v804 = vadd.f32 %v721, %v763
      %v805 = vadd.f32 %v722, %v768
      %v806 = vadd.f32 %v723, %v773
      %v807 = vadd.f32 %v724, %v778
      %v808 = vadd.f32 %v725, %v783
      %v809 = vadd.f32 %v726, %v788
      %v810 = vadd.f32 %v727, %v797
      %vm811 = vcmask 7168
      %812 = vst.msk [vmem:[%s171] sm:$0xff] %vm811, %v798
      %813 = vst.msk [vmem:[%s171 + $0x8] sm:$0xff] %vm811, %v799
      %814 = vst.msk [vmem:[%s171 + $0x10] sm:$0xff] %vm811, %v800
      %815 = vst.msk [vmem:[%s171 + $0x18] sm:$0xff] %vm811, %v801
      %816 = vst.msk [vmem:[%s171 + $0x20] sm:$0xff] %vm811, %v802
      %817 = vst.msk [vmem:[%s171 + $0x28] sm:$0xff] %vm811, %v803
      %818 = vst.msk [vmem:[%s171 + $0x30] sm:$0xff] %vm811, %v804
      %819 = vst.msk [vmem:[%s171 + $0x38] sm:$0xff] %vm811, %v805
      %820 = vst.msk [vmem:[%s171 + $0x40] sm:$0xff] %vm811, %v806
      %821 = vst.msk [vmem:[%s171 + $0x48] sm:$0xff] %vm811, %v807
      %822 = vst.msk [vmem:[%s171 + $0x50] sm:$0xff] %vm811, %v808
      %823 = vst.msk [vmem:[%s171 + $0x58] sm:$0xff] %vm811, %v809
      %vm824 = vcmask 3072
      %825 = vst.msk [vmem:[%s171 + $0x60] sm:$0xf] %vm824, %v810
      %v826 = vld [vmem:[%s171] sm:$0xff]
      %v827 = vld [vmem:[%s171 + $0x8] sm:$0xff]
      %v828 = vld [vmem:[%s171 + $0x10] sm:$0xff]
      %v829 = vld [vmem:[%s171 + $0x18] sm:$0xff]
      %v830 = vld [vmem:[%s171 + $0x20] sm:$0xff]
      %v831 = vld [vmem:[%s171 + $0x28] sm:$0xff]
      %v832 = vld [vmem:[%s171 + $0x30] sm:$0xff]
      %v833 = vld [vmem:[%s171 + $0x38] sm:$0xff]
      %v834 = vld [vmem:[%s171 + $0x40] sm:$0xff]
      %v835 = vld [vmem:[%s171 + $0x48] sm:$0xff]
      %v836 = vld [vmem:[%s171 + $0x50] sm:$0xff]
      %v837 = vld [vmem:[%s171 + $0x58] sm:$0xff]
      %v838 = vld [vmem:[%s171 + $0x60] sm:$0xf]
      %v839 = vmul.f32 %v676, %v676
      %v840 = vmul.f32 %v677, %v677
      %v841 = vmul.f32 %v678, %v678
      %v842 = vmul.f32 %v679, %v679
      %v843 = vmul.f32 %v680, %v680
      %v844 = vmul.f32 %v681, %v681
      %v845 = vmul.f32 %v682, %v682
      %v846 = vmul.f32 %v683, %v683
      %v847 = vmul.f32 %v684, %v684
      %v848 = vmul.f32 %v685, %v685
      %v849 = vmul.f32 %v686, %v686
      %v850 = vmul.f32 %v687, %v687
      %v851 = vmul.f32 %v688, %v688
      %v852 = vmul.f32 %v689, %v689
      %v853 = vmul.f32 %v690, %v690
      %v854 = vmul.f32 %v691, %v691
      %v855 = vmul.f32 %v692, %v692
      %v856 = vmul.f32 %v693, %v693
      %v857 = vmul.f32 %v694, %v694
      %v858 = vmul.f32 %v695, %v695
      %v859 = vmul.f32 %v696, %v696
      %v860 = vmul.f32 %v697, %v697
      %v861 = vmul.f32 %v698, %v698
      %v862 = vmul.f32 %v699, %v699
      %v863 = vmul.f32 %v700, %v700
      %v864 = vmul.f32 %v701, %v701
      %v865 = vmul.f32 %v702, %v702
      %v866 = vmul.f32 %v703, %v703
      %v867 = vmul.f32 %v704, %v704
      %v868 = vmul.f32 %v705, %v705
      %v869 = vmul.f32 %v706, %v706
      %v870 = vmul.f32 %v707, %v707
      %v871 = vmul.f32 %v708, %v708
      %v872 = vmul.f32 %v709, %v709
      %v873 = vmul.f32 %v710, %v710
      %v874 = vmul.f32 %v711, %v711
      %v875 = vmul.f32 %v712, %v712
      %v876 = vmul.f32 %v713, %v713
      %v877 = vmul.f32 %v714, %v714
      %v878 = vadd.f32 %v839, %v840
      %v879 = vsel %vm729, %v841, 0.0
      %v880 = vadd.f32 %v878, %v879
      %881 = vadd.xlane.f32.xlu0 %v880
      %v882 = vpop.xlane.xlu0 %881
      %v883 = vadd.f32 %v842, %v843
      %v884 = vsel %vm729, %v844, 0.0
      %v885 = vadd.f32 %v883, %v884
      %886 = vadd.xlane.f32.xlu0 %v885
      %v887 = vpop.xlane.xlu0 %886
      %v888 = vadd.f32 %v845, %v846
      %v889 = vsel %vm729, %v847, 0.0
      %v890 = vadd.f32 %v888, %v889
      %891 = vadd.xlane.f32.xlu0 %v890
      %v892 = vpop.xlane.xlu0 %891
      %v893 = vadd.f32 %v848, %v849
      %v894 = vsel %vm729, %v850, 0.0
      %v895 = vadd.f32 %v893, %v894
      %896 = vadd.xlane.f32.xlu0 %v895
      %v897 = vpop.xlane.xlu0 %896
      %v898 = vadd.f32 %v851, %v852
      %v899 = vsel %vm729, %v853, 0.0
      %v900 = vadd.f32 %v898, %v899
      %901 = vadd.xlane.f32.xlu0 %v900
      %v902 = vpop.xlane.xlu0 %901
      %v903 = vadd.f32 %v854, %v855
      %v904 = vsel %vm729, %v856, 0.0
      %v905 = vadd.f32 %v903, %v904
      %906 = vadd.xlane.f32.xlu0 %v905
      %v907 = vpop.xlane.xlu0 %906
      %v908 = vadd.f32 %v857, %v858
      %v909 = vsel %vm729, %v859, 0.0
      %v910 = vadd.f32 %v908, %v909
      %911 = vadd.xlane.f32.xlu0 %v910
      %v912 = vpop.xlane.xlu0 %911
      %v913 = vadd.f32 %v860, %v861
      %v914 = vsel %vm729, %v862, 0.0
      %v915 = vadd.f32 %v913, %v914
      %916 = vadd.xlane.f32.xlu0 %v915
      %v917 = vpop.xlane.xlu0 %916
      %v918 = vadd.f32 %v863, %v864
      %v919 = vsel %vm729, %v865, 0.0
      %v920 = vadd.f32 %v918, %v919
      %921 = vadd.xlane.f32.xlu0 %v920
      %v922 = vpop.xlane.xlu0 %921
      %v923 = vadd.f32 %v866, %v867
      %v924 = vsel %vm729, %v868, 0.0
      %v925 = vadd.f32 %v923, %v924
      %926 = vadd.xlane.f32.xlu0 %v925
      %v927 = vpop.xlane.xlu0 %926
      %v928 = vadd.f32 %v869, %v870
      %v929 = vsel %vm729, %v871, 0.0
      %v930 = vadd.f32 %v928, %v929
      %931 = vadd.xlane.f32.xlu0 %v930
      %v932 = vpop.xlane.xlu0 %931
      %v933 = vadd.f32 %v872, %v873
      %v934 = vsel %vm729, %v874, 0.0
      %v935 = vadd.f32 %v933, %v934
      %936 = vadd.xlane.f32.xlu0 %v935
      %v937 = vpop.xlane.xlu0 %936
      %v938 = vsel %vm789, %v875, 0.0
      %v939 = vsel %vm789, %v876, 0.0
      %v940 = vadd.f32 %v938, %v939
      %v941 = vsel %vm793, %v877, 0.0
      %v942 = vadd.f32 %v940, %v941
      %943 = vadd.xlane.f32.xlu0 %v942
      %v944 = vpop.xlane.xlu0 %943
      %v945 = vadd.f32 %v826, %v882
      %v946 = vadd.f32 %v827, %v887
      %v947 = vadd.f32 %v828, %v892
      %v948 = vadd.f32 %v829, %v897
      %v949 = vadd.f32 %v830, %v902
      %v950 = vadd.f32 %v831, %v907
      %v951 = vadd.f32 %v832, %v912
      %v952 = vadd.f32 %v833, %v917
      %v953 = vadd.f32 %v834, %v922
      %v954 = vadd.f32 %v835, %v927
      %v955 = vadd.f32 %v836, %v932
      %v956 = vadd.f32 %v837, %v937
      %v957 = vadd.f32 %v838, %v944
      %vm958 = vcmask 15368
      %959 = vst.msk [vmem:[%s171] sm:$0xff] %vm958, %v945
      %960 = vst.msk [vmem:[%s171 + $0x8] sm:$0xff] %vm958, %v946
      %961 = vst.msk [vmem:[%s171 + $0x10] sm:$0xff] %vm958, %v947
      %962 = vst.msk [vmem:[%s171 + $0x18] sm:$0xff] %vm958, %v948
      %963 = vst.msk [vmem:[%s171 + $0x20] sm:$0xff] %vm958, %v949
      %964 = vst.msk [vmem:[%s171 + $0x28] sm:$0xff] %vm958, %v950
      %965 = vst.msk [vmem:[%s171 + $0x30] sm:$0xff] %vm958, %v951
      %966 = vst.msk [vmem:[%s171 + $0x38] sm:$0xff] %vm958, %v952
      %967 = vst.msk [vmem:[%s171 + $0x40] sm:$0xff] %vm958, %v953
      %968 = vst.msk [vmem:[%s171 + $0x48] sm:$0xff] %vm958, %v954
      %969 = vst.msk [vmem:[%s171 + $0x50] sm:$0xff] %vm958, %v955
      %970 = vst.msk [vmem:[%s171 + $0x58] sm:$0xff] %vm958, %v956
      %vm971 = vcmask 11272
      %972 = vst.msk [vmem:[%s171 + $0x60] sm:$0xf] %vm971, %v957
      %p973 = scmp.lt.s32.totalorder %s17, 1
      %s974 = scalar_select %p973, %s17, 1
      %s975 = smul.addr %s974, 13
      %s976 = smul.addr %s975, 8
      %s977 = scalar_lea.vmem %s2, %s976
      // Predicated region
      $region33: #{model_forward.2} parent=27 // pred_check
        %p978 = pneg %p92
      $region34: #{model_forward.2} parent=27 // pred_check_branch
        %980 = sbr.rel (%p978) target = $region36
      $region35: #{model_forward.2} parent=27 // pred_region
        _
      $region36: #{model_forward.2} parent=27 // pred_fallthru
        _
    $region28: #{model_forward.2} parent=5 // pred_fallthru
      _
    %p981 = scmp.le.s32.totalorder 2, %s8
    // Predicated region
    $region37: #{model_forward.2} parent=5 // pred_check
      %p982 = pneg %p981
    $region38: #{model_forward.2} parent=5 // pred_check_branch
      %984 = sbr.rel (%p982) target = $region40
    $region39: #{model_forward.2} parent=5 // pred_region
      %s985 = ssub.s32 %s8, 2
      // Predicated region
      $region41: #{model_forward.2} parent=39 // pred_check
        %p986 = pneg %p98
      $region42: #{model_forward.2} parent=39 // pred_check_branch
        %988 = sbr.rel (%p986) target = $region44
      $region43: #{model_forward.2} parent=39 // pred_region
        %p989 = scmp.lt.s32.totalorder %s19, 1
        %s990 = scalar_select %p989, %s19, 1
        %s991 = smul.addr %s990, 13
        %s992 = smul.addr %s991, 8
        %s993 = scalar_lea.vmem %s2, %s992
      $region44: #{model_forward.2} parent=39 // pred_fallthru
        _
    $region40: #{model_forward.2} parent=5 // pred_fallthru
      _
  $region6: #{model_forward.2} parent=0 // loop_footer
    %s12 = sadd.s32 1, %s8
  $region7: #{model_forward.2} parent=0 // loop_footer_branch
    %7 = sbr.rel target = $region3
  $region8: #{model_forward.2} parent=0 // loop_exit
    _

</llo_original>
